<compile_context>
chip_gen: v7x
topology: tpu7x:2x2x1
jax: 0.10.0
libtpu: 0.0.40
codegen_flags: <defaults>
</compile_context>

<pallas_src>
import jax
import jax.numpy as jnp
import numpy as np
from jax import lax
from jax.experimental import pallas as pl
from jax.experimental.pallas import tpu as pltpu

N_EMBD = 32
BLOCK_SIZE = 8
N_HEAD = 4
HEAD_SIZE = N_EMBD // N_HEAD
LN_EPS = 1e-5
MATMUL_DTYPE = jnp.bfloat16   # MXU-native operand dtype on v5e/v6e/v7x


def _layernorm(h, gamma, beta):
    mu = jnp.mean(h, axis=-1, keepdims=True)
    var = jnp.mean(jnp.square(h - mu), axis=-1, keepdims=True)
    return (h - mu) * lax.rsqrt(var + LN_EPS) * gamma + beta


def block_kernel(
    x_ref,      # (1, T, C)            one batch element per grid step
    wqkv_ref,   # (3, N_HEAD, C, HS)   per-head Q/K/V weights (scale folded into Q), bf16
    wp_ref,     # (N_HEAD, HS, C)      per-head output-projection slabs, bf16
    w1_ref,     # (C, 4C)              MLP up-projection, bf16
    w2_ref,     # (4C, C)              MLP down-projection, bf16
    p_ref,      # (8, 4C)              f32 biases + LayerNorm params (see pack_params)
    o_ref,      # (1, T, C)
):
    C = N_EMBD
    x = x_ref[0]                       # (T, C) f32
    T = x.shape[0]

    bp = p_ref[0, :C]
    b1 = p_ref[1, :]
    b2 = p_ref[2, :C]
    g1 = p_ref[3, :C]
    be1 = p_ref[4, :C]
    g2 = p_ref[5, :C]
    be2 = p_ref[6, :C]

    # ---- ln1 (f32 stats) + batched-head attention ----
    h = _layernorm(x, g1, be1).astype(MATMUL_DTYPE)
    hb = jnp.broadcast_to(h[None], (N_HEAD, T, C))           # (H, T, C), tiny

    proj_dims = (((2,), (1,)), ((0,), (0,)))                  # contract C, batch over heads
    q = lax.dot_general(hb, wqkv_ref[0], proj_dims, preferred_element_type=jnp.float32)
    k = lax.dot_general(hb, wqkv_ref[1], proj_dims, preferred_element_type=jnp.float32)
    v = lax.dot_general(hb, wqkv_ref[2], proj_dims, preferred_element_type=jnp.float32)

    # scores (H, Tq, Tk); 1/sqrt(n_embd) is already folded into Wq.
    s = lax.dot_general(q.astype(MATMUL_DTYPE), k.astype(MATMUL_DTYPE),
                        (((2,), (2,)), ((0,), (0,))),
                        preferred_element_type=jnp.float32)

    # In-kernel causal mask (no HBM mask DMA).
    row = lax.broadcasted_iota(jnp.int32, (T, T), 0)
    col = lax.broadcasted_iota(jnp.int32, (T, T), 1)
    s = jnp.where((col <= row)[None], s, -jnp.inf)

    # Softmax in f32: row-max subtraction dropped (scores are O(1) after LN +
    # n_embd**-0.5 scaling; masked entries give exp(-inf)=0), exact divide.
    e = jnp.exp(s)
    p = e / jnp.sum(e, axis=-1, keepdims=True)
    # attention dropout -> identity (eval)

    o_h = lax.dot_general(p.astype(MATMUL_DTYPE), v.astype(MATMUL_DTYPE),
                          (((2,), (1,)), ((0,), (0,))),
                          preferred_element_type=jnp.float32)  # (H, T, HS)

    # Distributed output projection: sum_h o_h[h] @ Wp[h]  (no lane concat).
    attn = jnp.dot(o_h[0].astype(MATMUL_DTYPE), wp_ref[0],
                   preferred_element_type=jnp.float32)
    for hd in range(1, N_HEAD):
        attn = attn + jnp.dot(o_h[hd].astype(MATMUL_DTYPE), wp_ref[hd],
                              preferred_element_type=jnp.float32)
    attn = attn + bp
    # projection dropout -> identity (eval)

    out1 = x + attn                                           # residual 1

    # ---- ln2 + MLP (Linear -> Linear, no activation in the reference) ----
    h2 = _layernorm(out1, g2, be2).astype(MATMUL_DTYPE)
    ff = jnp.dot(h2, w1_ref[...], preferred_element_type=jnp.float32) + b1
    ff = jnp.dot(ff.astype(MATMUL_DTYPE), w2_ref[...],
                 preferred_element_type=jnp.float32) + b2
    # MLP dropout -> identity (eval)

    o_ref[0] = out1 + ff                                      # residual 2


def pack_params(params):
    """One-time packing (hoisted out of the forward pass per the perf review)."""
    C, H, HS = N_EMBD, N_HEAD, HEAD_SIZE

    def per_head_in(w):                           # (C, H*HS) -> (H, C, HS)
        return jnp.transpose(w.reshape(C, H, HS), (1, 0, 2))

    wq = per_head_in(params["wq"] * (C ** -0.5))  # fold 1/sqrt(n_embd) into Wq
    wk = per_head_in(params["wk"])
    wv = per_head_in(params["wv"])
    wqkv = jnp.stack([wq, wk, wv], axis=0).astype(MATMUL_DTYPE)   # (3, H, C, HS)
    wp = params["wp"].reshape(H, HS, C).astype(MATMUL_DTYPE)      # (H, HS, C)
    w1 = params["w1"].astype(MATMUL_DTYPE)                        # (C, 4C)
    w2 = params["w2"].astype(MATMUL_DTYPE)                        # (4C, C)

    pvec = jnp.zeros((8, 4 * C), jnp.float32)
    pvec = pvec.at[0, :C].set(params["bp"][0])
    pvec = pvec.at[1, :].set(params["b1"][0])
    pvec = pvec.at[2, :C].set(params["b2"][0])
    pvec = pvec.at[3, :C].set(params["g1"][0])
    pvec = pvec.at[4, :C].set(params["be1"][0])
    pvec = pvec.at[5, :C].set(params["g2"][0])
    pvec = pvec.at[6, :C].set(params["be2"][0])
    return wqkv, wp, w1, w2, pvec


@jax.jit
def block_forward(x, wqkv, wp, w1, w2, pvec):
    """x: (B, T, C) float32; remaining args are the pre-packed parameter slabs."""
    B, T, C = x.shape
    grid_spec = pltpu.PrefetchScalarGridSpec(
        num_scalar_prefetch=0,
        grid=(B,),
        in_specs=[
            pl.BlockSpec((1, T, C), lambda b: (b, 0, 0)),
            pl.BlockSpec(wqkv.shape, lambda b: (0, 0, 0, 0)),
            pl.BlockSpec(wp.shape, lambda b: (0, 0, 0)),
            pl.BlockSpec(w1.shape, lambda b: (0, 0)),
            pl.BlockSpec(w2.shape, lambda b: (0, 0)),
            pl.BlockSpec(pvec.shape, lambda b: (0, 0)),
        ],
        out_specs=pl.BlockSpec((1, T, C), lambda b: (b, 0, 0)),
    )
    return pl.pallas_call(
        block_kernel,
        out_shape=jax.ShapeDtypeStruct((B, T, C), jnp.float32),
        grid_spec=grid_spec,
        compiler_params=pltpu.CompilerParams(
            dimension_semantics=("parallel",)),   # batch axis -> both TCs on v7x
    )(x, wqkv, wp, w1, w2, pvec)


def init_params(key):
    C, H = N_EMBD, 4 * N_EMBD
    keys = jax.random.split(key, 9)

    def unif(k, shape, fan_in):
        bound = 1.0 / np.sqrt(fan_in)
        return jax.random.uniform(k, shape, jnp.float32, -bound, bound)

    return {
        # attention projections, (in, out) layout, heads concatenated along out dim
        "wq": unif(keys[0], (C, C), C),
        "wk": unif(keys[1], (C, C), C),
        "wv": unif(keys[2], (C, C), C),
        "wp": unif(keys[3], (C, C), C),
        "bp": unif(keys[4], (1, C), C),
        # MLP
        "w1": unif(keys[5], (C, H), C),
        "b1": unif(keys[6], (1, H), C),
        "w2": unif(keys[7], (H, C), H),
        "b2": unif(keys[8], (1, C), H),
        # LayerNorms (PyTorch default init)
        "g1": jnp.ones((1, C), jnp.float32),
        "be1": jnp.zeros((1, C), jnp.float32),
        "g2": jnp.ones((1, C), jnp.float32),
        "be2": jnp.zeros((1, C), jnp.float32),
    }


def block_reference(x, p):
    """Pure-JAX f32 reference mirroring the PyTorch forward (eval mode)."""
    B, T, C = x.shape

    def ln(h, g, b):
        mu = h.mean(-1, keepdims=True)
        var = ((h - mu) ** 2).mean(-1, keepdims=True)
        return (h - mu) / jnp.sqrt(var + LN_EPS) * g + b

    h = ln(x, p["g1"][0], p["be1"][0])
    q = h @ p["wq"]
    k = h @ p["wk"]
    v = h @ p["wv"]
    mask = jnp.tril(jnp.ones((T, T), bool))
    outs = []
    for hi in range(N_HEAD):
        sl = slice(hi * HEAD_SIZE, (hi + 1) * HEAD_SIZE)
        wei = (q[..., sl] @ jnp.swapaxes(k[..., sl], -1, -2)) * C ** (-0.5)
        wei = jnp.where(mask, wei, -jnp.inf)
        wei = jax.nn.softmax(wei, axis=-1)
        outs.append(wei @ v[..., sl])
    attn = jnp.concatenate(outs, -1) @ p["wp"] + p["bp"][0]
    out1 = x + attn
    h2 = ln(out1, p["g2"][0], p["be2"][0])
    ff = (h2 @ p["w1"] + p["b1"][0]) @ p["w2"] + p["b2"][0]
    return out1 + ff


if __name__ == "__main__":
    key = jax.random.PRNGKey(0)
    kx, kp = jax.random.split(key)

    B, T, C = 2, BLOCK_SIZE, N_EMBD
    x = jax.random.normal(kx, (B, T, C), jnp.float32)
    params = init_params(kp)

    packed = pack_params(params)          # hoisted: packed once, reused every call
    out = block_forward(x, *packed)
    out = jax.block_until_ready(out)

    ref = block_reference(x, params)
    # Tolerance covers bf16 matmul operands (f32 accumulation & f32 everywhere
    # else: LN stats, mask, softmax, residuals). Structural errors would be far
    # larger than this.
    np.testing.assert_allclose(np.asarray(out), np.asarray(ref), rtol=2e-2, atol=2e-2)

    print("KERNEL_OK")
</pallas_src>

<mosaic_0001>
module attributes {stable_mosaic.version = 11 : i64} {
  func.func @block_kernel(%arg0: i32, %arg1: memref<1x8x32xf32, #tpu.memory_space<vmem>>, %arg2: memref<3x4x32x8xbf16, #tpu.memory_space<vmem>>, %arg3: memref<4x8x32xbf16, #tpu.memory_space<vmem>>, %arg4: memref<32x128xbf16, #tpu.memory_space<vmem>>, %arg5: memref<128x32xbf16, #tpu.memory_space<vmem>>, %arg6: memref<8x128xf32, #tpu.memory_space<vmem>>, %arg7: memref<1x8x32xf32, #tpu.memory_space<vmem>>) attributes {dimension_semantics = [#tpu.dimension_semantics<parallel>], iteration_bounds = array<i64: 2>, scalar_prefetch = 0 : i64, scratch_operands = 0 : i64, tpu.core_type = #tpu.core_type<tc>, window_params = [{transform_indices = @transform_0, window_bounds = array<i64: 1, 8, 32>}, {pipeline_mode = #tpu.pipeline_mode<synchronous>, transform_indices = @transform_1, window_bounds = array<i64: 3, 4, 32, 8>}, {pipeline_mode = #tpu.pipeline_mode<synchronous>, transform_indices = @transform_2, window_bounds = array<i64: 4, 8, 32>}, {pipeline_mode = #tpu.pipeline_mode<synchronous>, transform_indices = @transform_3, window_bounds = array<i64: 32, 128>}, {pipeline_mode = #tpu.pipeline_mode<synchronous>, transform_indices = @transform_4, window_bounds = array<i64: 128, 32>}, {pipeline_mode = #tpu.pipeline_mode<synchronous>, transform_indices = @transform_5, window_bounds = array<i64: 8, 128>}, {transform_indices = @transform_6, window_bounds = array<i64: 1, 8, 32>}]} {
    %c0 = arith.constant 0 : index
    %c0_0 = arith.constant 0 : index
    %c0_1 = arith.constant 0 : index
    %0 = vector.load %arg1[%c0, %c0_0, %c0_1] : memref<1x8x32xf32, #tpu.memory_space<vmem>>, vector<1x8x32xf32>
    %1 = vector.shape_cast %0 : vector<1x8x32xf32> to vector<8x32xf32>
    %c0_2 = arith.constant 0 : index
    %c0_3 = arith.constant 0 : index
    %2 = vector.load %arg6[%c0_2, %c0_3] : memref<8x128xf32, #tpu.memory_space<vmem>>, vector<1x32xf32>
    %3 = vector.shape_cast %2 : vector<1x32xf32> to vector<32xf32>
    %c1 = arith.constant 1 : index
    %c0_4 = arith.constant 0 : index
    %4 = vector.load %arg6[%c1, %c0_4] : memref<8x128xf32, #tpu.memory_space<vmem>>, vector<1x128xf32>
    %5 = vector.shape_cast %4 : vector<1x128xf32> to vector<128xf32>
    %c2 = arith.constant 2 : index
    %c0_5 = arith.constant 0 : index
    %6 = vector.load %arg6[%c2, %c0_5] : memref<8x128xf32, #tpu.memory_space<vmem>>, vector<1x32xf32>
    %7 = vector.shape_cast %6 : vector<1x32xf32> to vector<32xf32>
    %c3 = arith.constant 3 : index
    %c0_6 = arith.constant 0 : index
    %8 = vector.load %arg6[%c3, %c0_6] : memref<8x128xf32, #tpu.memory_space<vmem>>, vector<1x32xf32>
    %9 = vector.shape_cast %8 : vector<1x32xf32> to vector<32xf32>
    %c4 = arith.constant 4 : index
    %c0_7 = arith.constant 0 : index
    %10 = vector.load %arg6[%c4, %c0_7] : memref<8x128xf32, #tpu.memory_space<vmem>>, vector<1x32xf32>
    %11 = vector.shape_cast %10 : vector<1x32xf32> to vector<32xf32>
    %c5 = arith.constant 5 : index
    %c0_8 = arith.constant 0 : index
    %12 = vector.load %arg6[%c5, %c0_8] : memref<8x128xf32, #tpu.memory_space<vmem>>, vector<1x32xf32>
    %13 = vector.shape_cast %12 : vector<1x32xf32> to vector<32xf32>
    %c6 = arith.constant 6 : index
    %c0_9 = arith.constant 0 : index
    %14 = vector.load %arg6[%c6, %c0_9] : memref<8x128xf32, #tpu.memory_space<vmem>>, vector<1x32xf32>
    %15 = vector.shape_cast %14 : vector<1x32xf32> to vector<32xf32>
    %cst = arith.constant dense<0.000000e+00> : vector<8xf32>
    %16 = vector.multi_reduction <add>, %1, %cst [1] : vector<8x32xf32> to vector<8xf32>
    %17 = vector.shape_cast %16 : vector<8xf32> to vector<8x1xf32>
    %cst_10 = arith.constant 3.200000e+01 : f32
    %18 = vector.broadcast %cst_10 : f32 to vector<8x1xf32>
    %19 = arith.divf %17, %18 : vector<8x1xf32>
    %20 = vector.broadcast %19 : vector<8x1xf32> to vector<8x32xf32>
    %21 = arith.subf %1, %20 : vector<8x32xf32>
    %22 = arith.mulf %21, %21 : vector<8x32xf32>
    %cst_11 = arith.constant dense<0.000000e+00> : vector<8xf32>
    %23 = vector.multi_reduction <add>, %22, %cst_11 [1] : vector<8x32xf32> to vector<8xf32>
    %24 = vector.shape_cast %23 : vector<8xf32> to vector<8x1xf32>
    %cst_12 = arith.constant 3.200000e+01 : f32
    %25 = vector.broadcast %cst_12 : f32 to vector<8x1xf32>
    %26 = arith.divf %24, %25 : vector<8x1xf32>
    %27 = vector.broadcast %19 : vector<8x1xf32> to vector<8x32xf32>
    %28 = arith.subf %1, %27 : vector<8x32xf32>
    %cst_13 = arith.constant 9.99999974E-6 : f32
    %29 = vector.broadcast %cst_13 : f32 to vector<8x1xf32>
    %30 = arith.addf %26, %29 : vector<8x1xf32>
    %31 = math.rsqrt %30 : vector<8x1xf32>
    %32 = vector.broadcast %31 : vector<8x1xf32> to vector<8x32xf32>
    %33 = arith.mulf %28, %32 : vector<8x32xf32>
    %34 = vector.shape_cast %9 : vector<32xf32> to vector<1x32xf32>
    %35 = vector.broadcast %34 : vector<1x32xf32> to vector<8x32xf32>
    %36 = arith.mulf %33, %35 : vector<8x32xf32>
    %37 = vector.shape_cast %11 : vector<32xf32> to vector<1x32xf32>
    %38 = vector.broadcast %37 : vector<1x32xf32> to vector<8x32xf32>
    %39 = arith.addf %36, %38 : vector<8x32xf32>
    %40 = arith.truncf %39 : vector<8x32xf32> to vector<8x32xbf16>
    %41 = vector.shape_cast %40 : vector<8x32xbf16> to vector<1x8x32xbf16>
    %42 = vector.shape_cast %41 : vector<1x8x32xbf16> to vector<1x8x32xbf16>
    %43 = vector.broadcast %42 : vector<1x8x32xbf16> to vector<4x8x32xbf16>
    %c0_14 = arith.constant 0 : index
    %c0_15 = arith.constant 0 : index
    %c0_16 = arith.constant 0 : index
    %c0_17 = arith.constant 0 : index
    %44 = vector.load %arg2[%c0_14, %c0_15, %c0_16, %c0_17] : memref<3x4x32x8xbf16, #tpu.memory_space<vmem>>, vector<1x4x32x8xbf16>
    %45 = vector.shape_cast %44 : vector<1x4x32x8xbf16> to vector<4x32x8xbf16>
    %cst_18 = arith.constant dense<0.000000e+00> : vector<4x8x8xf32>
    %46 = tpu.matmul %43, %45, %cst_18 {dimension_numbers = #tpu.dot_dimension_numbers<[2], [1], [1], [2], [0, 0, 0, 1, 1, 2], [0], [0]>} : vector<4x8x32xbf16>, vector<4x32x8xbf16>, vector<4x8x8xf32> -> vector<4x8x8xf32>
    %c1_19 = arith.constant 1 : index
    %c0_20 = arith.constant 0 : index
    %c0_21 = arith.constant 0 : index
    %c0_22 = arith.constant 0 : index
    %47 = vector.load %arg2[%c1_19, %c0_20, %c0_21, %c0_22] : memref<3x4x32x8xbf16, #tpu.memory_space<vmem>>, vector<1x4x32x8xbf16>
    %48 = vector.shape_cast %47 : vector<1x4x32x8xbf16> to vector<4x32x8xbf16>
    %cst_23 = arith.constant dense<0.000000e+00> : vector<4x8x8xf32>
    %49 = tpu.matmul %43, %48, %cst_23 {dimension_numbers = #tpu.dot_dimension_numbers<[2], [1], [1], [2], [0, 0, 0, 1, 1, 2], [0], [0]>} : vector<4x8x32xbf16>, vector<4x32x8xbf16>, vector<4x8x8xf32> -> vector<4x8x8xf32>
    %c2_24 = arith.constant 2 : index
    %c0_25 = arith.constant 0 : index
    %c0_26 = arith.constant 0 : index
    %c0_27 = arith.constant 0 : index
    %50 = vector.load %arg2[%c2_24, %c0_25, %c0_26, %c0_27] : memref<3x4x32x8xbf16, #tpu.memory_space<vmem>>, vector<1x4x32x8xbf16>
    %51 = vector.shape_cast %50 : vector<1x4x32x8xbf16> to vector<4x32x8xbf16>
    %cst_28 = arith.constant dense<0.000000e+00> : vector<4x8x8xf32>
    %52 = tpu.matmul %43, %51, %cst_28 {dimension_numbers = #tpu.dot_dimension_numbers<[2], [1], [1], [2], [0, 0, 0, 1, 1, 2], [0], [0]>} : vector<4x8x32xbf16>, vector<4x32x8xbf16>, vector<4x8x8xf32> -> vector<4x8x8xf32>
    %53 = arith.truncf %46 : vector<4x8x8xf32> to vector<4x8x8xbf16>
    %54 = arith.truncf %49 : vector<4x8x8xf32> to vector<4x8x8xbf16>
    %cst_29 = arith.constant dense<0.000000e+00> : vector<4x8x8xf32>
    %55 = tpu.matmul %53, %54, %cst_29 {dimension_numbers = #tpu.dot_dimension_numbers<[2], [2], [1], [1], [0, 0, 0, 1, 1, 1], [0], [0]>} : vector<4x8x8xbf16>, vector<4x8x8xbf16>, vector<4x8x8xf32> -> vector<4x8x8xf32>
    %56 = tpu.iota {dimensions = array<i32: 0>} : vector<8x8xi32>
    %57 = tpu.iota {dimensions = array<i32: 1>} : vector<8x8xi32>
    %58 = arith.cmpi sle, %57, %56 : vector<8x8xi32>
    %59 = vector.shape_cast %58 : vector<8x8xi1> to vector<1x8x8xi1>
    %cst_30 = arith.constant 0xFF800000 : f32
    %60 = vector.shape_cast %59 : vector<1x8x8xi1> to vector<1x8x8xi1>
    %61 = vector.broadcast %60 : vector<1x8x8xi1> to vector<4x8x8xi1>
    %62 = vector.broadcast %cst_30 : f32 to vector<4x8x8xf32>
    %63 = arith.select %61, %55, %62 : vector<4x8x8xi1>, vector<4x8x8xf32>
    %64 = math.exp %63 : vector<4x8x8xf32>
    %cst_31 = arith.constant dense<0.000000e+00> : vector<4x8xf32>
    %65 = vector.multi_reduction <add>, %64, %cst_31 [2] : vector<4x8x8xf32> to vector<4x8xf32>
    %66 = vector.shape_cast %65 : vector<4x8xf32> to vector<4x8x1xf32>
    %67 = vector.broadcast %66 : vector<4x8x1xf32> to vector<4x8x8xf32>
    %68 = arith.divf %64, %67 : vector<4x8x8xf32>
    %69 = arith.truncf %68 : vector<4x8x8xf32> to vector<4x8x8xbf16>
    %70 = arith.truncf %52 : vector<4x8x8xf32> to vector<4x8x8xbf16>
    %cst_32 = arith.constant dense<0.000000e+00> : vector<4x8x8xf32>
    %71 = tpu.matmul %69, %70, %cst_32 {dimension_numbers = #tpu.dot_dimension_numbers<[2], [1], [1], [2], [0, 0, 0, 1, 1, 2], [0], [0]>} : vector<4x8x8xbf16>, vector<4x8x8xbf16>, vector<4x8x8xf32> -> vector<4x8x8xf32>
    %72 = vector.extract_strided_slice %71 {offsets = [0, 0, 0], sizes = [1, 8, 8], strides = [1, 1, 1]} : vector<4x8x8xf32> to vector<1x8x8xf32>
    %73 = vector.shape_cast %72 : vector<1x8x8xf32> to vector<8x8xf32>
    %74 = arith.truncf %73 : vector<8x8xf32> to vector<8x8xbf16>
    %c0_33 = arith.constant 0 : index
    %c0_34 = arith.constant 0 : index
    %c0_35 = arith.constant 0 : index
    %75 = vector.load %arg3[%c0_33, %c0_34, %c0_35] : memref<4x8x32xbf16, #tpu.memory_space<vmem>>, vector<1x8x32xbf16>
    %76 = vector.shape_cast %75 : vector<1x8x32xbf16> to vector<8x32xbf16>
    %cst_36 = arith.constant dense<0.000000e+00> : vector<8x32xf32>
    %77 = tpu.matmul %74, %76, %cst_36 {dimension_numbers = #tpu.dot_dimension_numbers<[1], [0], [0], [1], [0, 0, 1, 1], [], []>} : vector<8x8xbf16>, vector<8x32xbf16>, vector<8x32xf32> -> vector<8x32xf32>
    %78 = vector.extract_strided_slice %71 {offsets = [1, 0, 0], sizes = [1, 8, 8], strides = [1, 1, 1]} : vector<4x8x8xf32> to vector<1x8x8xf32>
    %79 = vector.shape_cast %78 : vector<1x8x8xf32> to vector<8x8xf32>
    %80 = arith.truncf %79 : vector<8x8xf32> to vector<8x8xbf16>
    %c1_37 = arith.constant 1 : index
    %c0_38 = arith.constant 0 : index
    %c0_39 = arith.constant 0 : index
    %81 = vector.load %arg3[%c1_37, %c0_38, %c0_39] : memref<4x8x32xbf16, #tpu.memory_space<vmem>>, vector<1x8x32xbf16>
    %82 = vector.shape_cast %81 : vector<1x8x32xbf16> to vector<8x32xbf16>
    %cst_40 = arith.constant dense<0.000000e+00> : vector<8x32xf32>
    %83 = tpu.matmul %80, %82, %cst_40 {dimension_numbers = #tpu.dot_dimension_numbers<[1], [0], [0], [1], [0, 0, 1, 1], [], []>} : vector<8x8xbf16>, vector<8x32xbf16>, vector<8x32xf32> -> vector<8x32xf32>
    %84 = arith.addf %77, %83 : vector<8x32xf32>
    %85 = vector.extract_strided_slice %71 {offsets = [2, 0, 0], sizes = [1, 8, 8], strides = [1, 1, 1]} : vector<4x8x8xf32> to vector<1x8x8xf32>
    %86 = vector.shape_cast %85 : vector<1x8x8xf32> to vector<8x8xf32>
    %87 = arith.truncf %86 : vector<8x8xf32> to vector<8x8xbf16>
    %c2_41 = arith.constant 2 : index
    %c0_42 = arith.constant 0 : index
    %c0_43 = arith.constant 0 : index
    %88 = vector.load %arg3[%c2_41, %c0_42, %c0_43] : memref<4x8x32xbf16, #tpu.memory_space<vmem>>, vector<1x8x32xbf16>
    %89 = vector.shape_cast %88 : vector<1x8x32xbf16> to vector<8x32xbf16>
    %cst_44 = arith.constant dense<0.000000e+00> : vector<8x32xf32>
    %90 = tpu.matmul %87, %89, %cst_44 {dimension_numbers = #tpu.dot_dimension_numbers<[1], [0], [0], [1], [0, 0, 1, 1], [], []>} : vector<8x8xbf16>, vector<8x32xbf16>, vector<8x32xf32> -> vector<8x32xf32>
    %91 = arith.addf %84, %90 : vector<8x32xf32>
    %92 = vector.extract_strided_slice %71 {offsets = [3, 0, 0], sizes = [1, 8, 8], strides = [1, 1, 1]} : vector<4x8x8xf32> to vector<1x8x8xf32>
    %93 = vector.shape_cast %92 : vector<1x8x8xf32> to vector<8x8xf32>
    %94 = arith.truncf %93 : vector<8x8xf32> to vector<8x8xbf16>
    %c3_45 = arith.constant 3 : index
    %c0_46 = arith.constant 0 : index
    %c0_47 = arith.constant 0 : index
    %95 = vector.load %arg3[%c3_45, %c0_46, %c0_47] : memref<4x8x32xbf16, #tpu.memory_space<vmem>>, vector<1x8x32xbf16>
    %96 = vector.shape_cast %95 : vector<1x8x32xbf16> to vector<8x32xbf16>
    %cst_48 = arith.constant dense<0.000000e+00> : vector<8x32xf32>
    %97 = tpu.matmul %94, %96, %cst_48 {dimension_numbers = #tpu.dot_dimension_numbers<[1], [0], [0], [1], [0, 0, 1, 1], [], []>} : vector<8x8xbf16>, vector<8x32xbf16>, vector<8x32xf32> -> vector<8x32xf32>
    %98 = arith.addf %91, %97 : vector<8x32xf32>
    %99 = vector.shape_cast %3 : vector<32xf32> to vector<1x32xf32>
    %100 = vector.broadcast %99 : vector<1x32xf32> to vector<8x32xf32>
    %101 = arith.addf %98, %100 : vector<8x32xf32>
    %102 = arith.addf %1, %101 : vector<8x32xf32>
    %cst_49 = arith.constant dense<0.000000e+00> : vector<8xf32>
    %103 = vector.multi_reduction <add>, %102, %cst_49 [1] : vector<8x32xf32> to vector<8xf32>
    %104 = vector.shape_cast %103 : vector<8xf32> to vector<8x1xf32>
    %cst_50 = arith.constant 3.200000e+01 : f32
    %105 = vector.broadcast %cst_50 : f32 to vector<8x1xf32>
    %106 = arith.divf %104, %105 : vector<8x1xf32>
    %107 = vector.broadcast %106 : vector<8x1xf32> to vector<8x32xf32>
    %108 = arith.subf %102, %107 : vector<8x32xf32>
    %109 = arith.mulf %108, %108 : vector<8x32xf32>
    %cst_51 = arith.constant dense<0.000000e+00> : vector<8xf32>
    %110 = vector.multi_reduction <add>, %109, %cst_51 [1] : vector<8x32xf32> to vector<8xf32>
    %111 = vector.shape_cast %110 : vector<8xf32> to vector<8x1xf32>
    %cst_52 = arith.constant 3.200000e+01 : f32
    %112 = vector.broadcast %cst_52 : f32 to vector<8x1xf32>
    %113 = arith.divf %111, %112 : vector<8x1xf32>
    %114 = vector.broadcast %106 : vector<8x1xf32> to vector<8x32xf32>
    %115 = arith.subf %102, %114 : vector<8x32xf32>
    %cst_53 = arith.constant 9.99999974E-6 : f32
    %116 = vector.broadcast %cst_53 : f32 to vector<8x1xf32>
    %117 = arith.addf %113, %116 : vector<8x1xf32>
    %118 = math.rsqrt %117 : vector<8x1xf32>
    %119 = vector.broadcast %118 : vector<8x1xf32> to vector<8x32xf32>
    %120 = arith.mulf %115, %119 : vector<8x32xf32>
    %121 = vector.shape_cast %13 : vector<32xf32> to vector<1x32xf32>
    %122 = vector.broadcast %121 : vector<1x32xf32> to vector<8x32xf32>
    %123 = arith.mulf %120, %122 : vector<8x32xf32>
    %124 = vector.shape_cast %15 : vector<32xf32> to vector<1x32xf32>
    %125 = vector.broadcast %124 : vector<1x32xf32> to vector<8x32xf32>
    %126 = arith.addf %123, %125 : vector<8x32xf32>
    %127 = arith.truncf %126 : vector<8x32xf32> to vector<8x32xbf16>
    %c0_54 = arith.constant 0 : index
    %c0_55 = arith.constant 0 : index
    %128 = vector.load %arg4[%c0_54, %c0_55] : memref<32x128xbf16, #tpu.memory_space<vmem>>, vector<32x128xbf16>
    %cst_56 = arith.constant dense<0.000000e+00> : vector<8x128xf32>
    %129 = tpu.matmul %127, %128, %cst_56 {dimension_numbers = #tpu.dot_dimension_numbers<[1], [0], [0], [1], [0, 0, 1, 1], [], []>} : vector<8x32xbf16>, vector<32x128xbf16>, vector<8x128xf32> -> vector<8x128xf32>
    %130 = vector.shape_cast %5 : vector<128xf32> to vector<1x128xf32>
    %131 = vector.broadcast %130 : vector<1x128xf32> to vector<8x128xf32>
    %132 = arith.addf %129, %131 : vector<8x128xf32>
    %133 = arith.truncf %132 : vector<8x128xf32> to vector<8x128xbf16>
    %c0_57 = arith.constant 0 : index
    %c0_58 = arith.constant 0 : index
    %134 = vector.load %arg5[%c0_57, %c0_58] : memref<128x32xbf16, #tpu.memory_space<vmem>>, vector<128x32xbf16>
    %cst_59 = arith.constant dense<0.000000e+00> : vector<8x32xf32>
    %135 = tpu.matmul %133, %134, %cst_59 {dimension_numbers = #tpu.dot_dimension_numbers<[1], [0], [0], [1], [0, 0, 1, 1], [], []>} : vector<8x128xbf16>, vector<128x32xbf16>, vector<8x32xf32> -> vector<8x32xf32>
    %136 = vector.shape_cast %7 : vector<32xf32> to vector<1x32xf32>
    %137 = vector.broadcast %136 : vector<1x32xf32> to vector<8x32xf32>
    %138 = arith.addf %135, %137 : vector<8x32xf32>
    %139 = arith.addf %102, %138 : vector<8x32xf32>
    %c0_60 = arith.constant 0 : index
    %c0_61 = arith.constant 0 : index
    %c0_62 = arith.constant 0 : index
    %140 = vector.load %arg7[%c0_60, %c0_61, %c0_62] : memref<1x8x32xf32, #tpu.memory_space<vmem>>, vector<1x8x32xf32>
    %141 = vector.shape_cast %140 : vector<1x8x32xf32> to vector<8x32xf32>
    %142 = vector.shape_cast %139 : vector<8x32xf32> to vector<1x8x32xf32>
    tpu.vector_store %arg7[%c0_60, %c0_61, %c0_62], %142 {strides = array<i32>} : memref<1x8x32xf32, #tpu.memory_space<vmem>>, vector<1x8x32xf32>,
    return
  }
  func.func @transform_0(%arg0: i32) -> (i32, i32, i32) {
    %c0_i32 = arith.constant 0 : i32
    %c0_i32_0 = arith.constant 0 : i32
    %c0_i32_1 = arith.constant 0 : i32
    return %arg0, %c0_i32, %c0_i32_0 : i32, i32, i32
  }
  func.func @transform_1(%arg0: i32) -> (i32, i32, i32, i32) {
    %c0_i32 = arith.constant 0 : i32
    %c0_i32_0 = arith.constant 0 : i32
    %c0_i32_1 = arith.constant 0 : i32
    %c0_i32_2 = arith.constant 0 : i32
    %c0_i32_3 = arith.constant 0 : i32
    return %c0_i32, %c0_i32_0, %c0_i32_1, %c0_i32_2 : i32, i32, i32, i32
  }
  func.func @transform_2(%arg0: i32) -> (i32, i32, i32) {
    %c0_i32 = arith.constant 0 : i32
    %c0_i32_0 = arith.constant 0 : i32
    %c0_i32_1 = arith.constant 0 : i32
    %c0_i32_2 = arith.constant 0 : i32
    return %c0_i32, %c0_i32_0, %c0_i32_1 : i32, i32, i32
  }
  func.func @transform_3(%arg0: i32) -> (i32, i32) {
    %c0_i32 = arith.constant 0 : i32
    %c0_i32_0 = arith.constant 0 : i32
    %c0_i32_1 = arith.constant 0 : i32
    return %c0_i32, %c0_i32_0 : i32, i32
  }
  func.func @transform_4(%arg0: i32) -> (i32, i32) {
    %c0_i32 = arith.constant 0 : i32
    %c0_i32_0 = arith.constant 0 : i32
    %c0_i32_1 = arith.constant 0 : i32
    return %c0_i32, %c0_i32_0 : i32, i32
  }
  func.func @transform_5(%arg0: i32) -> (i32, i32) {
    %c0_i32 = arith.constant 0 : i32
    %c0_i32_0 = arith.constant 0 : i32
    %c0_i32_1 = arith.constant 0 : i32
    return %c0_i32, %c0_i32_0 : i32, i32
  }
  func.func @transform_6(%arg0: i32) -> (i32, i32, i32) {
    %c0_i32 = arith.constant 0 : i32
    %c0_i32_0 = arith.constant 0 : i32
    %c0_i32_1 = arith.constant 0 : i32
    return %arg0, %c0_i32, %c0_i32_0 : i32, i32, i32
  }
}

</mosaic_0001>

<llo_original>
// kernel: block_forward.1
$region0: #{block_forward.1}
  #allocation0 [shape = 'u32[]', space=smem, size = 0x4, offset = 0x4, fixed_abs, tag = 'smem constant byte address 0x4 - core index']
  #allocation1 [shape = 'u32[144,128]{1,0:T(1,128)}', space=vmem, size = 0x12000, scoped, tag = 'internal scratch']
  %s0 = inlined_call_operand.vmem [shape: f32[2,8,32], index: 0, kind: input, shape index: {}]
  %s1 = inlined_call_operand.vmem [shape: bf16[3,4,32,8], index: 1, kind: input, shape index: {}]
  %s2 = inlined_call_operand.vmem [shape: bf16[4,8,32], index: 2, kind: input, shape index: {}]
  %s3 = inlined_call_operand.vmem [shape: bf16[32,128], index: 3, kind: input, shape index: {}]
  %s4 = inlined_call_operand.vmem [shape: bf16[128,32], index: 4, kind: input, shape index: {}]
  %s5 = inlined_call_operand.vmem [shape: f32[8,128], index: 5, kind: input, shape index: {}]
  %s6 = inlined_call_operand.hbm [shape: f32[2,8,32], index: 6, kind: output, shape index: {}]
  %s7 = sld [smem:[#allocation0]]
  $region57: #{block_forward.1} parent=0
    _
  %s9 = ssub.s32 1, %s7
  %s10 = scalar_select 0, %s9, %s7
  $region1: #{block_forward.1} parent=0
    #allocation2 [shape = 'u8[8192]{0}', space=vmem, size = 0x2000, scoped, tag = 'output window, operand 0']
    #allocation3 [shape = 's32[2]{0}', space=sflag, size = 0x8, scoped, tag = 'scoped memory for block_forward.1']
    %11 = vsyncpa [#allocation3], 0
    %s12 = scalar_lea.sflag [#allocation3], 1
    %13 = vsyncpa %s12, 0
    loop: start=0, step=1, limit=4
    $region2: #{block_forward.1} parent=1 // loop_pre_header
      _
    $region3: #{block_forward.1} parent=1 // loop_header
      %s15 = sphi 0, %s19
      %p16 = scmp.ge.s32.totalorder %s15, 4
      %s25 = sphi 0, %s27
      %s28 = sphi 0, %s25
      %s29 = sphi 0, %s28
      %s45 = sphi 0, %s29
      %s49 = sphi 0, %s49
      %s51 = sphi 0, %s49
      %s52 = sphi 0, %s51
      %s66 = sphi 0, %s52
      %s70 = sphi 0, %s70
      %s72 = sphi 0, %s70
      %s73 = sphi 0, %s72
      %s87 = sphi 0, %s73
      %s91 = sphi 0, %s91
      %s93 = sphi 0, %s91
      %s94 = sphi 0, %s93
      %s108 = sphi 0, %s94
      %s112 = sphi 0, %s112
      %s114 = sphi 0, %s112
      %s115 = sphi 0, %s114
      %s129 = sphi 0, %s115
      %s133 = sphi 0, %s133
      %s135 = sphi 0, %s133
      %s136 = sphi 0, %s135
      %s150 = sphi 0, %s136
      %s156 = sphi 0, %s158
      %s159 = sphi 0, %s156
      %s160 = sphi 0, %s159
      %s176 = sphi 0, %s160
    $region4: #{block_forward.1} parent=1 // loop_header_branch
      %18 = sbr.rel (%p16) target = $region8
    $region5: #{block_forward.1} parent=1 // loop_body
      %s20 = ssub.s32 %s15, 1
      %s21 = ssub.s32 %s15, 2
      %s22 = sadd.s32 %s15, 1
      %s23 = ssub.s32 %s15, %s22
      %p24 = scmp.eq.s32.totalorder %s23, 0
      %s26 = sadd.s32 %s25, 1
      %s27 = scalar_select %p24, %s25, %s26
      %p30 = pneg %p24
      %p31 = scmp.eq.s32.totalorder %s15, 1
      %p32 = por %p30, %p31
      %p33 = scmp.ne.s32.totalorder %s25, %s28
      %p34 = scmp.eq.s32.totalorder %s15, 0
      %p35 = por %p33, %p34
      %p36 = scmp.ne.s32.totalorder %s25, %s28
      %p37 = scmp.eq.s32.totalorder %s20, 1
      %p38 = por %p36, %p37
      %p39 = scmp.ne.s32.totalorder %s28, %s29
      %p40 = scmp.eq.s32.totalorder %s20, 0
      %p41 = por %p39, %p40
      %p42 = scmp.ne.s32.totalorder %s28, %s29
      %p43 = scmp.eq.s32.totalorder %s21, 1
      %p44 = por %p42, %p43
      %p46 = scmp.ne.s32.totalorder %s29, %s45
      %p47 = scmp.eq.s32.totalorder %s21, 0
      %p48 = por %p46, %p47
      %s50 = sadd.s32 %s49, 1
      %p53 = scmp.eq.s32.totalorder %s15, 1
      %p54 = scmp.ne.s32.totalorder %s49, %s51
      %p55 = scmp.eq.s32.totalorder %s15, 0
      %p56 = por %p54, %p55
      %p57 = scmp.ne.s32.totalorder %s49, %s51
      %p58 = scmp.eq.s32.totalorder %s20, 1
      %p59 = por %p57, %p58
      %p60 = scmp.ne.s32.totalorder %s51, %s52
      %p61 = scmp.eq.s32.totalorder %s20, 0
      %p62 = por %p60, %p61
      %p63 = scmp.ne.s32.totalorder %s51, %s52
      %p64 = scmp.eq.s32.totalorder %s21, 1
      %p65 = por %p63, %p64
      %p67 = scmp.ne.s32.totalorder %s52, %s66
      %p68 = scmp.eq.s32.totalorder %s21, 0
      %p69 = por %p67, %p68
      %s71 = sadd.s32 %s70, 1
      %p74 = scmp.eq.s32.totalorder %s15, 1
      %p75 = scmp.ne.s32.totalorder %s70, %s72
      %p76 = scmp.eq.s32.totalorder %s15, 0
      %p77 = por %p75, %p76
      %p78 = scmp.ne.s32.totalorder %s70, %s72
      %p79 = scmp.eq.s32.totalorder %s20, 1
      %p80 = por %p78, %p79
      %p81 = scmp.ne.s32.totalorder %s72, %s73
      %p82 = scmp.eq.s32.totalorder %s20, 0
      %p83 = por %p81, %p82
      %p84 = scmp.ne.s32.totalorder %s72, %s73
      %p85 = scmp.eq.s32.totalorder %s21, 1
      %p86 = por %p84, %p85
      %p88 = scmp.ne.s32.totalorder %s73, %s87
      %p89 = scmp.eq.s32.totalorder %s21, 0
      %p90 = por %p88, %p89
      %s92 = sadd.s32 %s91, 1
      %p95 = scmp.eq.s32.totalorder %s15, 1
      %p96 = scmp.ne.s32.totalorder %s91, %s93
      %p97 = scmp.eq.s32.totalorder %s15, 0
      %p98 = por %p96, %p97
      %p99 = scmp.ne.s32.totalorder %s91, %s93
      %p100 = scmp.eq.s32.totalorder %s20, 1
      %p101 = por %p99, %p100
      %p102 = scmp.ne.s32.totalorder %s93, %s94
      %p103 = scmp.eq.s32.totalorder %s20, 0
      %p104 = por %p102, %p103
      %p105 = scmp.ne.s32.totalorder %s93, %s94
      %p106 = scmp.eq.s32.totalorder %s21, 1
      %p107 = por %p105, %p106
      %p109 = scmp.ne.s32.totalorder %s94, %s108
      %p110 = scmp.eq.s32.totalorder %s21, 0
      %p111 = por %p109, %p110
      %s113 = sadd.s32 %s112, 1
      %p116 = scmp.eq.s32.totalorder %s15, 1
      %p117 = scmp.ne.s32.totalorder %s112, %s114
      %p118 = scmp.eq.s32.totalorder %s15, 0
      %p119 = por %p117, %p118
      %p120 = scmp.ne.s32.totalorder %s112, %s114
      %p121 = scmp.eq.s32.totalorder %s20, 1
      %p122 = por %p120, %p121
      %p123 = scmp.ne.s32.totalorder %s114, %s115
      %p124 = scmp.eq.s32.totalorder %s20, 0
      %p125 = por %p123, %p124
      %p126 = scmp.ne.s32.totalorder %s114, %s115
      %p127 = scmp.eq.s32.totalorder %s21, 1
      %p128 = por %p126, %p127
      %p130 = scmp.ne.s32.totalorder %s115, %s129
      %p131 = scmp.eq.s32.totalorder %s21, 0
      %p132 = por %p130, %p131
      %s134 = sadd.s32 %s133, 1
      %p137 = scmp.eq.s32.totalorder %s15, 1
      %p138 = scmp.ne.s32.totalorder %s133, %s135
      %p139 = scmp.eq.s32.totalorder %s15, 0
      %p140 = por %p138, %p139
      %p141 = scmp.ne.s32.totalorder %s133, %s135
      %p142 = scmp.eq.s32.totalorder %s20, 1
      %p143 = por %p141, %p142
      %p144 = scmp.ne.s32.totalorder %s135, %s136
      %p145 = scmp.eq.s32.totalorder %s20, 0
      %p146 = por %p144, %p145
      %p147 = scmp.ne.s32.totalorder %s135, %s136
      %p148 = scmp.eq.s32.totalorder %s21, 1
      %p149 = por %p147, %p148
      %p151 = scmp.ne.s32.totalorder %s136, %s150
      %p152 = scmp.eq.s32.totalorder %s21, 0
      %p153 = por %p151, %p152
      %s154 = ssub.s32 %s15, %s22
      %p155 = scmp.eq.s32.totalorder %s154, 0
      %s157 = sadd.s32 %s156, 1
      %s158 = scalar_select %p155, %s156, %s157
      %p161 = pneg %p155
      %p162 = scmp.eq.s32.totalorder %s15, 1
      %p163 = por %p161, %p162
      %p164 = scmp.ne.s32.totalorder %s156, %s159
      %p165 = scmp.eq.s32.totalorder %s15, 0
      %p166 = por %p164, %p165
      %p167 = scmp.ne.s32.totalorder %s156, %s159
      %p168 = scmp.eq.s32.totalorder %s20, 1
      %p169 = por %p167, %p168
      %p170 = scmp.ne.s32.totalorder %s159, %s160
      %p171 = scmp.eq.s32.totalorder %s20, 0
      %p172 = por %p170, %p171
      %p173 = scmp.ne.s32.totalorder %s159, %s160
      %p174 = scmp.eq.s32.totalorder %s21, 1
      %p175 = por %p173, %p174
      %p177 = scmp.ne.s32.totalorder %s160, %s176
      %p178 = scmp.eq.s32.totalorder %s21, 0
      %p179 = por %p177, %p178
      %p180 = scmp.le.s32.totalorder 1, %s15
      %p181 = scmp.lt.s32.totalorder %s15, 3
      %p182 = pnand %p180, %p181
      %p183 = pneg %p182
      // Predicated region
      $region9: #{block_forward.1} parent=5 // pred_check
        _
      $region10: #{block_forward.1} parent=5 // pred_check_branch
        %185 = sbr.rel (%p182) target = $region12
      $region11: #{block_forward.1} parent=5 // pred_region
        %s186 = ssub.s32 %s15, 1
        // Predicated region
        $region13: #{block_forward.1} parent=11 // pred_check
          %p187 = pneg %p62
        $region14: #{block_forward.1} parent=11 // pred_check_branch
          %189 = sbr.rel (%p187) target = $region16
        $region15: #{block_forward.1} parent=11 // pred_region
          _
        $region16: #{block_forward.1} parent=11 // pred_fallthru
          _
        // Predicated region
        $region17: #{block_forward.1} parent=11 // pred_check
          %p190 = pneg %p83
        $region18: #{block_forward.1} parent=11 // pred_check_branch
          %192 = sbr.rel (%p190) target = $region20
        $region19: #{block_forward.1} parent=11 // pred_region
          _
        $region20: #{block_forward.1} parent=11 // pred_fallthru
          _
        // Predicated region
        $region21: #{block_forward.1} parent=11 // pred_check
          %p193 = pneg %p104
        $region22: #{block_forward.1} parent=11 // pred_check_branch
          %195 = sbr.rel (%p193) target = $region24
        $region23: #{block_forward.1} parent=11 // pred_region
          _
        $region24: #{block_forward.1} parent=11 // pred_fallthru
          _
        // Predicated region
        $region25: #{block_forward.1} parent=11 // pred_check
          %p196 = pneg %p125
        $region26: #{block_forward.1} parent=11 // pred_check_branch
          %198 = sbr.rel (%p196) target = $region28
        $region27: #{block_forward.1} parent=11 // pred_region
          _
        $region28: #{block_forward.1} parent=11 // pred_fallthru
          _
        // Predicated region
        $region29: #{block_forward.1} parent=11 // pred_check
          %p199 = pneg %p146
        $region30: #{block_forward.1} parent=11 // pred_check_branch
          %201 = sbr.rel (%p199) target = $region32
        $region31: #{block_forward.1} parent=11 // pred_region
          _
        $region32: #{block_forward.1} parent=11 // pred_fallthru
          _
      $region12: #{block_forward.1} parent=5 // pred_fallthru
        _
      %p202 = scmp.lt.s32.totalorder %s15, 2
      // Predicated region
      $region33: #{block_forward.1} parent=5 // pred_check
        %p203 = pneg %p202
      $region34: #{block_forward.1} parent=5 // pred_check_branch
        %205 = sbr.rel (%p203) target = $region36
      $region35: #{block_forward.1} parent=5 // pred_region
        // Predicated region
        $region37: #{block_forward.1} parent=35 // pred_check
          %p206 = pneg %p35
        $region38: #{block_forward.1} parent=35 // pred_check_branch
          %208 = sbr.rel (%p206) target = $region40
        $region39: #{block_forward.1} parent=35 // pred_region
          %p209 = scmp.lt.s32.totalorder %s15, 1
          %s210 = scalar_select %p209, %s15, 1
          %s211 = smul.addr %s210, 8
          %s212 = scalar_lea.vmem %s0, %s211
        $region40: #{block_forward.1} parent=35 // pred_fallthru
          _
      $region36: #{block_forward.1} parent=5 // pred_fallthru
        _
      %p213 = scmp.le.s32.totalorder 1, %s15
      %p214 = scmp.lt.s32.totalorder %s15, 3
      %p215 = pnand %p213, %p214
      %p216 = pneg %p215
      // Predicated region
      $region41: #{block_forward.1} parent=5 // pred_check
        _
      $region42: #{block_forward.1} parent=5 // pred_check_branch
        %218 = sbr.rel (%p215) target = $region44
      $region43: #{block_forward.1} parent=5 // pred_region
        %s219 = ssub.s32 %s15, 1
        %p220 = scmp.lt.s32.totalorder %s20, 1
        %s221 = scalar_select %p220, %s20, 1
        %s222 = smul.addr %s221, 8
        %s223 = scalar_lea.vmem %s0, %s222
        %p224 = pneg %p41
        %p225 = pneg %p38
        %p226 = pneg %p62
        %p227 = pneg %p59
        %p228 = pneg %p83
        %p229 = pneg %p80
        %p230 = pneg %p104
        %p231 = pneg %p101
        %p232 = pneg %p125
        %p233 = pneg %p122
        %p234 = pneg %p146
        %p235 = pneg %p143
        %p236 = pneg %p172
        %p237 = pneg %p169
        %s238 = sand.u32 %s159, 1
        %s239 = scalar_lea.sflag [#allocation3], %s238
        %s240 = sand.u32 %s159, 1
        %s241 = smul.addr %s240, 8
        %s242 = scalar_lea.vmem [#allocation2], %s241
        %p243 = scmp.lt.s32.totalorder %s20, 1
        %s244 = scalar_select %p243, %s20, 1
        %s245 = smul.addr %s244, 8
        %s246 = scalar_lea.vmem %s0, %s245
        %v248 = vld [vmem:[%s246] sm:$0xff]
        %v249 = vld [vmem:[%s5] sm:$0x1]
        %v250 = vld [vmem:[%s5 + $0x1] sm:$0x1]
        %v251 = vld [vmem:[%s5 + $0x2] sm:$0x1]
        %v252 = vld [vmem:[%s5 + $0x3] sm:$0x1]
        %v253 = vld [vmem:[%s5 + $0x4] sm:$0x1]
        %v254 = vld [vmem:[%s5 + $0x5] sm:$0x1]
        %v255 = vld [vmem:[%s5 + $0x6] sm:$0x1]
        %vm256 = vcmask 261120
        %v257 = vsel %vm256, %v248, 0.0
        %258 = vadd.xlane.f32.xlu0 %v257
        %v259 = vpop.xlane.xlu0 %258
        %v260 = vrcp.pop 32.0
        %v261 = vmul.f32 %v259, %v260
        %v262 = vsub.f32 %v248, %v261
        %v263 = vmul.f32 %v262, %v262
        %v264 = vsel %vm256, %v263, 0.0
        %265 = vadd.xlane.f32.xlu0 %v264
        %v266 = vpop.xlane.xlu0 %265
        %v267 = vmul.f32 %v266, %v260
        %v268 = vadd.f32 %v267, 1e-05
        %v269 = vrsqrt.pop %v268
        %v270 = vmul.f32 %v262, %v269
        %v271 = vlaneseq
        %v272 = vshrl.u32 %v271, 7
        %v273 = vsub.s32 0, %v272
        %v274 = vrot.slane %v252, %v273
        %v275 = vmul.f32 %v270, %v274
        %v276 = vlaneseq
        %v277 = vshrl.u32 %v276, 7
        %v278 = vsub.s32 0, %v277
        %v279 = vrot.slane %v253, %v278
        %v280 = vadd.f32 %v275, %v279
        %v281 = vpack.c.bf16 %v280, %v280
        %v282 = vld [vmem:[%s1] sm:$0xf]
        %v283 = vld [vmem:[%s1 + $0x4] sm:$0xf]
        %v284 = vld [vmem:[%s1 + $0x8] sm:$0xf]
        %v285 = vld [vmem:[%s1 + $0xc] sm:$0xf]
        %v286 = vld [vmem:[%s1 + $0x10] sm:$0xf]
        %v287 = vld [vmem:[%s1 + $0x14] sm:$0xf]
        %v288 = vld [vmem:[%s1 + $0x18] sm:$0xf]
        %v289 = vld [vmem:[%s1 + $0x1c] sm:$0xf]
        %v290 = vld [vmem:[%s1 + $0x20] sm:$0xf]
        %v291 = vld [vmem:[%s1 + $0x24] sm:$0xf]
        %v292 = vld [vmem:[%s1 + $0x28] sm:$0xf]
        %v293 = vld [vmem:[%s1 + $0x2c] sm:$0xf]
        %v294 = vld [vmem:[%s1 + $0x30] sm:$0xf]
        %v295 = vld [vmem:[%s1 + $0x34] sm:$0xf]
        %v296 = vld [vmem:[%s1 + $0x38] sm:$0xf]
        %v297 = vld [vmem:[%s1 + $0x3c] sm:$0xf]
        %v302 = vunpack.c.l.b16 %v282
        %v303 = vunpack.c.l.b16 %v283
        %v304 = vunpack.c.l.b16 %v284
        %v305 = vunpack.c.l.b16 %v285
        %v306 = vpack.c.b16 %v303, %v302
        %v307 = vpack.c.b16 %v305, %v304
        %v311 = vsel %vm256, %v281, 0
        %313 = vmatprep.subr.bf16.mxu0 0
        %314 = vmatpush1.bf16.msra.mxu0 %v306
        %315 = vmatprep.subr.bf16.mxu0 0
        %316 = vmatpush1.bf16.msra.mxu0 %v307
        %317 = vmatprep.subr.bf16.mxu0 0
        %318 = vmatpush1.bf16.msra.mxu0 0
        %319 = vmatprep.subr.bf16.mxu0 0
        %320 = vmatpush1.bf16.msra.mxu0 0
        %321 = vmatprep.subr.bf16.mxu0 0
        %322 = vmatpush1.bf16.msra.mxu0 0
        %323 = vmatprep.subr.bf16.mxu0 0
        %324 = vmatpush1.bf16.msra.mxu0 0
        %325 = vmatprep.subr.bf16.mxu0 0
        %326 = vmatpush1.bf16.msra.mxu0 0
        %327 = vmatprep.subr.bf16.mxu0 0
        %328 = vmatpush1.bf16.msra.mxu0 0
        %329 = vmatprep.subr.bf16.mxu0 0
        %330 = vmatpush1.bf16.msra.mxu0 0
        %331 = vmatprep.subr.bf16.mxu0 0
        %332 = vmatpush1.bf16.msra.mxu0 0
        %333 = vmatprep.subr.bf16.mxu0 0
        %334 = vmatpush1.bf16.msra.mxu0 0
        %335 = vmatprep.subr.bf16.mxu0 0
        %336 = vmatpush1.bf16.msra.mxu0 0
        %337 = vmatprep.subr.bf16.mxu0 0
        %338 = vmatpush1.bf16.msra.mxu0 0
        %339 = vmatprep.subr.bf16.mxu0 0
        %340 = vmatpush1.bf16.msra.mxu0 0
        %341 = vmatprep.subr.bf16.mxu0 0
        %342 = vmatpush1.bf16.msra.mxu0 0
        %343 = vmatprep.subr.bf16.mxu0 0
        %344 = vmatpush1.bf16.msra.mxu0 0
        %345 = vmatprep.mubr.bf16.mxu0 0
        %346 = vmatmul.mubr.bf16.gmra.mrb[0].mxu0 %v311
        %v347 = vpop.f32.mrb[0].mxu0
        %v348 = vadd.f32 0.0, %v347
        %v349 = vpop.f32.mrb[0].mxu0
        %v350 = vpop.f32.mrb[0].mxu0
        %v351 = vpop.f32.mrb[0].mxu0
        %352 = vdwg.mxu0
        %v357 = vunpack.c.l.b16 %v286
        %v358 = vunpack.c.l.b16 %v287
        %v359 = vunpack.c.l.b16 %v288
        %v360 = vunpack.c.l.b16 %v289
        %v361 = vpack.c.b16 %v358, %v357
        %v362 = vpack.c.b16 %v360, %v359
        %365 = vmatprep.subr.bf16.mxu0 0
        %366 = vmatpush1.bf16.msra.mxu0 %v361
        %367 = vmatprep.subr.bf16.mxu0 0
        %368 = vmatpush1.bf16.msra.mxu0 %v362
        %369 = vmatprep.subr.bf16.mxu0 0
        %370 = vmatpush1.bf16.msra.mxu0 0
        %371 = vmatprep.subr.bf16.mxu0 0
        %372 = vmatpush1.bf16.msra.mxu0 0
        %373 = vmatprep.subr.bf16.mxu0 0
        %374 = vmatpush1.bf16.msra.mxu0 0
        %375 = vmatprep.subr.bf16.mxu0 0
        %376 = vmatpush1.bf16.msra.mxu0 0
        %377 = vmatprep.subr.bf16.mxu0 0
        %378 = vmatpush1.bf16.msra.mxu0 0
        %379 = vmatprep.subr.bf16.mxu0 0
        %380 = vmatpush1.bf16.msra.mxu0 0
        %381 = vmatprep.subr.bf16.mxu0 0
        %382 = vmatpush1.bf16.msra.mxu0 0
        %383 = vmatprep.subr.bf16.mxu0 0
        %384 = vmatpush1.bf16.msra.mxu0 0
        %385 = vmatprep.subr.bf16.mxu0 0
        %386 = vmatpush1.bf16.msra.mxu0 0
        %387 = vmatprep.subr.bf16.mxu0 0
        %388 = vmatpush1.bf16.msra.mxu0 0
        %389 = vmatprep.subr.bf16.mxu0 0
        %390 = vmatpush1.bf16.msra.mxu0 0
        %391 = vmatprep.subr.bf16.mxu0 0
        %392 = vmatpush1.bf16.msra.mxu0 0
        %393 = vmatprep.subr.bf16.mxu0 0
        %394 = vmatpush1.bf16.msra.mxu0 0
        %395 = vmatprep.subr.bf16.mxu0 0
        %396 = vmatpush1.bf16.msra.mxu0 0
        %397 = vmatprep.mubr.bf16.mxu0 0
        %398 = vmatmul.mubr.bf16.gmra.mrb[0].mxu0 %v311
        %v399 = vpop.f32.mrb[0].mxu0
        %v400 = vadd.f32 0.0, %v399
        %v401 = vpop.f32.mrb[0].mxu0
        %v402 = vpop.f32.mrb[0].mxu0
        %v403 = vpop.f32.mrb[0].mxu0
        %404 = vdwg.mxu0
        %v409 = vunpack.c.l.b16 %v290
        %v410 = vunpack.c.l.b16 %v291
        %v411 = vunpack.c.l.b16 %v292
        %v412 = vunpack.c.l.b16 %v293
        %v413 = vpack.c.b16 %v410, %v409
        %v414 = vpack.c.b16 %v412, %v411
        %417 = vmatprep.subr.bf16.mxu0 0
        %418 = vmatpush1.bf16.msra.mxu0 %v413
        %419 = vmatprep.subr.bf16.mxu0 0
        %420 = vmatpush1.bf16.msra.mxu0 %v414
        %421 = vmatprep.subr.bf16.mxu0 0
        %422 = vmatpush1.bf16.msra.mxu0 0
        %423 = vmatprep.subr.bf16.mxu0 0
        %424 = vmatpush1.bf16.msra.mxu0 0
        %425 = vmatprep.subr.bf16.mxu0 0
        %426 = vmatpush1.bf16.msra.mxu0 0
        %427 = vmatprep.subr.bf16.mxu0 0
        %428 = vmatpush1.bf16.msra.mxu0 0
        %429 = vmatprep.subr.bf16.mxu0 0
        %430 = vmatpush1.bf16.msra.mxu0 0
        %431 = vmatprep.subr.bf16.mxu0 0
        %432 = vmatpush1.bf16.msra.mxu0 0
        %433 = vmatprep.subr.bf16.mxu0 0
        %434 = vmatpush1.bf16.msra.mxu0 0
        %435 = vmatprep.subr.bf16.mxu0 0
        %436 = vmatpush1.bf16.msra.mxu0 0
        %437 = vmatprep.subr.bf16.mxu0 0
        %438 = vmatpush1.bf16.msra.mxu0 0
        %439 = vmatprep.subr.bf16.mxu0 0
        %440 = vmatpush1.bf16.msra.mxu0 0
        %441 = vmatprep.subr.bf16.mxu0 0
        %442 = vmatpush1.bf16.msra.mxu0 0
        %443 = vmatprep.subr.bf16.mxu0 0
        %444 = vmatpush1.bf16.msra.mxu0 0
        %445 = vmatprep.subr.bf16.mxu0 0
        %446 = vmatpush1.bf16.msra.mxu0 0
        %447 = vmatprep.subr.bf16.mxu0 0
        %448 = vmatpush1.bf16.msra.mxu0 0
        %449 = vmatprep.mubr.bf16.mxu0 0
        %450 = vmatmul.mubr.bf16.gmra.mrb[0].mxu0 %v311
        %v451 = vpop.f32.mrb[0].mxu0
        %v452 = vadd.f32 0.0, %v451
        %v453 = vpop.f32.mrb[0].mxu0
        %v454 = vpop.f32.mrb[0].mxu0
        %v455 = vpop.f32.mrb[0].mxu0
        %456 = vdwg.mxu0
        %v461 = vunpack.c.l.b16 %v294
        %v462 = vunpack.c.l.b16 %v295
        %v463 = vunpack.c.l.b16 %v296
        %v464 = vunpack.c.l.b16 %v297
        %v465 = vpack.c.b16 %v462, %v461
        %v466 = vpack.c.b16 %v464, %v463
        %469 = vmatprep.subr.bf16.mxu0 0
        %470 = vmatpush1.bf16.msra.mxu0 %v465
        %471 = vmatprep.subr.bf16.mxu0 0
        %472 = vmatpush1.bf16.msra.mxu0 %v466
        %473 = vmatprep.subr.bf16.mxu0 0
        %474 = vmatpush1.bf16.msra.mxu0 0
        %475 = vmatprep.subr.bf16.mxu0 0
        %476 = vmatpush1.bf16.msra.mxu0 0
        %477 = vmatprep.subr.bf16.mxu0 0
        %478 = vmatpush1.bf16.msra.mxu0 0
        %479 = vmatprep.subr.bf16.mxu0 0
        %480 = vmatpush1.bf16.msra.mxu0 0
        %481 = vmatprep.subr.bf16.mxu0 0
        %482 = vmatpush1.bf16.msra.mxu0 0
        %483 = vmatprep.subr.bf16.mxu0 0
        %484 = vmatpush1.bf16.msra.mxu0 0
        %485 = vmatprep.subr.bf16.mxu0 0
        %486 = vmatpush1.bf16.msra.mxu0 0
        %487 = vmatprep.subr.bf16.mxu0 0
        %488 = vmatpush1.bf16.msra.mxu0 0
        %489 = vmatprep.subr.bf16.mxu0 0
        %490 = vmatpush1.bf16.msra.mxu0 0
        %491 = vmatprep.subr.bf16.mxu0 0
        %492 = vmatpush1.bf16.msra.mxu0 0
        %493 = vmatprep.subr.bf16.mxu0 0
        %494 = vmatpush1.bf16.msra.mxu0 0
        %495 = vmatprep.subr.bf16.mxu0 0
        %496 = vmatpush1.bf16.msra.mxu0 0
        %497 = vmatprep.subr.bf16.mxu0 0
        %498 = vmatpush1.bf16.msra.mxu0 0
        %499 = vmatprep.subr.bf16.mxu0 0
        %500 = vmatpush1.bf16.msra.mxu0 0
        %501 = vmatprep.mubr.bf16.mxu0 0
        %502 = vmatmul.mubr.bf16.gmra.mrb[0].mxu0 %v311
        %v503 = vpop.f32.mrb[0].mxu0
        %v504 = vadd.f32 0.0, %v503
        %v505 = vpop.f32.mrb[0].mxu0
        %v506 = vpop.f32.mrb[0].mxu0
        %v507 = vpop.f32.mrb[0].mxu0
        %508 = vdwg.mxu0
        %s509 = scalar_lea.vmem %s1, 64
        %v510 = vld [vmem:[%s509] sm:$0xf]
        %v511 = vld [vmem:[%s509 + $0x4] sm:$0xf]
        %v512 = vld [vmem:[%s509 + $0x8] sm:$0xf]
        %v513 = vld [vmem:[%s509 + $0xc] sm:$0xf]
        %v514 = vld [vmem:[%s509 + $0x10] sm:$0xf]
        %v515 = vld [vmem:[%s509 + $0x14] sm:$0xf]
        %v516 = vld [vmem:[%s509 + $0x18] sm:$0xf]
        %v517 = vld [vmem:[%s509 + $0x1c] sm:$0xf]
        %v518 = vld [vmem:[%s509 + $0x20] sm:$0xf]
        %v519 = vld [vmem:[%s509 + $0x24] sm:$0xf]
        %v520 = vld [vmem:[%s509 + $0x28] sm:$0xf]
        %v521 = vld [vmem:[%s509 + $0x2c] sm:$0xf]
        %v522 = vld [vmem:[%s509 + $0x30] sm:$0xf]
        %v523 = vld [vmem:[%s509 + $0x34] sm:$0xf]
        %v524 = vld [vmem:[%s509 + $0x38] sm:$0xf]
        %v525 = vld [vmem:[%s509 + $0x3c] sm:$0xf]
        %v530 = vunpack.c.l.b16 %v510
        %v531 = vunpack.c.l.b16 %v511
        %v532 = vunpack.c.l.b16 %v512
        %v533 = vunpack.c.l.b16 %v513
        %v534 = vpack.c.b16 %v531, %v530
        %v535 = vpack.c.b16 %v533, %v532
        %538 = vmatprep.subr.bf16.mxu0 0
        %539 = vmatpush1.bf16.msra.mxu0 %v534
        %540 = vmatprep.subr.bf16.mxu0 0
        %541 = vmatpush1.bf16.msra.mxu0 %v535
        %542 = vmatprep.subr.bf16.mxu0 0
        %543 = vmatpush1.bf16.msra.mxu0 0
        %544 = vmatprep.subr.bf16.mxu0 0
        %545 = vmatpush1.bf16.msra.mxu0 0
        %546 = vmatprep.subr.bf16.mxu0 0
        %547 = vmatpush1.bf16.msra.mxu0 0
        %548 = vmatprep.subr.bf16.mxu0 0
        %549 = vmatpush1.bf16.msra.mxu0 0
        %550 = vmatprep.subr.bf16.mxu0 0
        %551 = vmatpush1.bf16.msra.mxu0 0
        %552 = vmatprep.subr.bf16.mxu0 0
        %553 = vmatpush1.bf16.msra.mxu0 0
        %554 = vmatprep.subr.bf16.mxu0 0
        %555 = vmatpush1.bf16.msra.mxu0 0
        %556 = vmatprep.subr.bf16.mxu0 0
        %557 = vmatpush1.bf16.msra.mxu0 0
        %558 = vmatprep.subr.bf16.mxu0 0
        %559 = vmatpush1.bf16.msra.mxu0 0
        %560 = vmatprep.subr.bf16.mxu0 0
        %561 = vmatpush1.bf16.msra.mxu0 0
        %562 = vmatprep.subr.bf16.mxu0 0
        %563 = vmatpush1.bf16.msra.mxu0 0
        %564 = vmatprep.subr.bf16.mxu0 0
        %565 = vmatpush1.bf16.msra.mxu0 0
        %566 = vmatprep.subr.bf16.mxu0 0
        %567 = vmatpush1.bf16.msra.mxu0 0
        %568 = vmatprep.subr.bf16.mxu0 0
        %569 = vmatpush1.bf16.msra.mxu0 0
        %570 = vmatprep.mubr.bf16.mxu0 0
        %571 = vmatmul.mubr.bf16.gmra.mrb[0].mxu0 %v311
        %v572 = vpop.f32.mrb[0].mxu0
        %v573 = vadd.f32 0.0, %v572
        %v574 = vpop.f32.mrb[0].mxu0
        %v575 = vpop.f32.mrb[0].mxu0
        %v576 = vpop.f32.mrb[0].mxu0
        %577 = vdwg.mxu0
        %v582 = vunpack.c.l.b16 %v514
        %v583 = vunpack.c.l.b16 %v515
        %v584 = vunpack.c.l.b16 %v516
        %v585 = vunpack.c.l.b16 %v517
        %v586 = vpack.c.b16 %v583, %v582
        %v587 = vpack.c.b16 %v585, %v584
        %590 = vmatprep.subr.bf16.mxu0 0
        %591 = vmatpush1.bf16.msra.mxu0 %v586
        %592 = vmatprep.subr.bf16.mxu0 0
        %593 = vmatpush1.bf16.msra.mxu0 %v587
        %594 = vmatprep.subr.bf16.mxu0 0
        %595 = vmatpush1.bf16.msra.mxu0 0
        %596 = vmatprep.subr.bf16.mxu0 0
        %597 = vmatpush1.bf16.msra.mxu0 0
        %598 = vmatprep.subr.bf16.mxu0 0
        %599 = vmatpush1.bf16.msra.mxu0 0
        %600 = vmatprep.subr.bf16.mxu0 0
        %601 = vmatpush1.bf16.msra.mxu0 0
        %602 = vmatprep.subr.bf16.mxu0 0
        %603 = vmatpush1.bf16.msra.mxu0 0
        %604 = vmatprep.subr.bf16.mxu0 0
        %605 = vmatpush1.bf16.msra.mxu0 0
        %606 = vmatprep.subr.bf16.mxu0 0
        %607 = vmatpush1.bf16.msra.mxu0 0
        %608 = vmatprep.subr.bf16.mxu0 0
        %609 = vmatpush1.bf16.msra.mxu0 0
        %610 = vmatprep.subr.bf16.mxu0 0
        %611 = vmatpush1.bf16.msra.mxu0 0
        %612 = vmatprep.subr.bf16.mxu0 0
        %613 = vmatpush1.bf16.msra.mxu0 0
        %614 = vmatprep.subr.bf16.mxu0 0
        %615 = vmatpush1.bf16.msra.mxu0 0
        %616 = vmatprep.subr.bf16.mxu0 0
        %617 = vmatpush1.bf16.msra.mxu0 0
        %618 = vmatprep.subr.bf16.mxu0 0
        %619 = vmatpush1.bf16.msra.mxu0 0
        %620 = vmatprep.subr.bf16.mxu0 0
        %621 = vmatpush1.bf16.msra.mxu0 0
        %622 = vmatprep.mubr.bf16.mxu0 0
        %623 = vmatmul.mubr.bf16.gmra.mrb[0].mxu0 %v311
        %v624 = vpop.f32.mrb[0].mxu0
        %v625 = vadd.f32 0.0, %v624
        %v626 = vpop.f32.mrb[0].mxu0
        %v627 = vpop.f32.mrb[0].mxu0
        %v628 = vpop.f32.mrb[0].mxu0
        %629 = vdwg.mxu0
        %v634 = vunpack.c.l.b16 %v518
        %v635 = vunpack.c.l.b16 %v519
        %v636 = vunpack.c.l.b16 %v520
        %v637 = vunpack.c.l.b16 %v521
        %v638 = vpack.c.b16 %v635, %v634
        %v639 = vpack.c.b16 %v637, %v636
        %642 = vmatprep.subr.bf16.mxu0 0
        %643 = vmatpush1.bf16.msra.mxu0 %v638
        %644 = vmatprep.subr.bf16.mxu0 0
        %645 = vmatpush1.bf16.msra.mxu0 %v639
        %646 = vmatprep.subr.bf16.mxu0 0
        %647 = vmatpush1.bf16.msra.mxu0 0
        %648 = vmatprep.subr.bf16.mxu0 0
        %649 = vmatpush1.bf16.msra.mxu0 0
        %650 = vmatprep.subr.bf16.mxu0 0
        %651 = vmatpush1.bf16.msra.mxu0 0
        %652 = vmatprep.subr.bf16.mxu0 0
        %653 = vmatpush1.bf16.msra.mxu0 0
        %654 = vmatprep.subr.bf16.mxu0 0
        %655 = vmatpush1.bf16.msra.mxu0 0
        %656 = vmatprep.subr.bf16.mxu0 0
        %657 = vmatpush1.bf16.msra.mxu0 0
        %658 = vmatprep.subr.bf16.mxu0 0
        %659 = vmatpush1.bf16.msra.mxu0 0
        %660 = vmatprep.subr.bf16.mxu0 0
        %661 = vmatpush1.bf16.msra.mxu0 0
        %662 = vmatprep.subr.bf16.mxu0 0
        %663 = vmatpush1.bf16.msra.mxu0 0
        %664 = vmatprep.subr.bf16.mxu0 0
        %665 = vmatpush1.bf16.msra.mxu0 0
        %666 = vmatprep.subr.bf16.mxu0 0
        %667 = vmatpush1.bf16.msra.mxu0 0
        %668 = vmatprep.subr.bf16.mxu0 0
        %669 = vmatpush1.bf16.msra.mxu0 0
        %670 = vmatprep.subr.bf16.mxu0 0
        %671 = vmatpush1.bf16.msra.mxu0 0
        %672 = vmatprep.subr.bf16.mxu0 0
        %673 = vmatpush1.bf16.msra.mxu0 0
        %674 = vmatprep.mubr.bf16.mxu0 0
        %675 = vmatmul.mubr.bf16.gmra.mrb[0].mxu0 %v311
        %v676 = vpop.f32.mrb[0].mxu0
        %v677 = vadd.f32 0.0, %v676
        %v678 = vpop.f32.mrb[0].mxu0
        %v679 = vpop.f32.mrb[0].mxu0
        %v680 = vpop.f32.mrb[0].mxu0
        %681 = vdwg.mxu0
        %v686 = vunpack.c.l.b16 %v522
        %v687 = vunpack.c.l.b16 %v523
        %v688 = vunpack.c.l.b16 %v524
        %v689 = vunpack.c.l.b16 %v525
        %v690 = vpack.c.b16 %v687, %v686
        %v691 = vpack.c.b16 %v689, %v688
        %694 = vmatprep.subr.bf16.mxu0 0
        %695 = vmatpush1.bf16.msra.mxu0 %v690
        %696 = vmatprep.subr.bf16.mxu0 0
        %697 = vmatpush1.bf16.msra.mxu0 %v691
        %698 = vmatprep.subr.bf16.mxu0 0
        %699 = vmatpush1.bf16.msra.mxu0 0
        %700 = vmatprep.subr.bf16.mxu0 0
        %701 = vmatpush1.bf16.msra.mxu0 0
        %702 = vmatprep.subr.bf16.mxu0 0
        %703 = vmatpush1.bf16.msra.mxu0 0
        %704 = vmatprep.subr.bf16.mxu0 0
        %705 = vmatpush1.bf16.msra.mxu0 0
        %706 = vmatprep.subr.bf16.mxu0 0
        %707 = vmatpush1.bf16.msra.mxu0 0
        %708 = vmatprep.subr.bf16.mxu0 0
        %709 = vmatpush1.bf16.msra.mxu0 0
        %710 = vmatprep.subr.bf16.mxu0 0
        %711 = vmatpush1.bf16.msra.mxu0 0
        %712 = vmatprep.subr.bf16.mxu0 0
        %713 = vmatpush1.bf16.msra.mxu0 0
        %714 = vmatprep.subr.bf16.mxu0 0
        %715 = vmatpush1.bf16.msra.mxu0 0
        %716 = vmatprep.subr.bf16.mxu0 0
        %717 = vmatpush1.bf16.msra.mxu0 0
        %718 = vmatprep.subr.bf16.mxu0 0
        %719 = vmatpush1.bf16.msra.mxu0 0
        %720 = vmatprep.subr.bf16.mxu0 0
        %721 = vmatpush1.bf16.msra.mxu0 0
        %722 = vmatprep.subr.bf16.mxu0 0
        %723 = vmatpush1.bf16.msra.mxu0 0
        %724 = vmatprep.subr.bf16.mxu0 0
        %725 = vmatpush1.bf16.msra.mxu0 0
        %726 = vmatprep.mubr.bf16.mxu0 0
        %727 = vmatmul.mubr.bf16.gmra.mrb[0].mxu0 %v311
        %v728 = vpop.f32.mrb[0].mxu0
        %v729 = vadd.f32 0.0, %v728
        %v730 = vpop.f32.mrb[0].mxu0
        %v731 = vpop.f32.mrb[0].mxu0
        %v732 = vpop.f32.mrb[0].mxu0
        %733 = vdwg.mxu0
        %s734 = scalar_lea.vmem %s1, 128
        %v735 = vld [vmem:[%s734] sm:$0xf]
        %v736 = vld [vmem:[%s734 + $0x4] sm:$0xf]
        %v737 = vld [vmem:[%s734 + $0x8] sm:$0xf]
        %v738 = vld [vmem:[%s734 + $0xc] sm:$0xf]
        %v739 = vld [vmem:[%s734 + $0x10] sm:$0xf]
        %v740 = vld [vmem:[%s734 + $0x14] sm:$0xf]
        %v741 = vld [vmem:[%s734 + $0x18] sm:$0xf]
        %v742 = vld [vmem:[%s734 + $0x1c] sm:$0xf]
        %v743 = vld [vmem:[%s734 + $0x20] sm:$0xf]
        %v744 = vld [vmem:[%s734 + $0x24] sm:$0xf]
        %v745 = vld [vmem:[%s734 + $0x28] sm:$0xf]
        %v746 = vld [vmem:[%s734 + $0x2c] sm:$0xf]
        %v747 = vld [vmem:[%s734 + $0x30] sm:$0xf]
        %v748 = vld [vmem:[%s734 + $0x34] sm:$0xf]
        %v749 = vld [vmem:[%s734 + $0x38] sm:$0xf]
        %v750 = vld [vmem:[%s734 + $0x3c] sm:$0xf]
        %v755 = vunpack.c.l.b16 %v735
        %v756 = vunpack.c.l.b16 %v736
        %v757 = vunpack.c.l.b16 %v737
        %v758 = vunpack.c.l.b16 %v738
        %v759 = vpack.c.b16 %v756, %v755
        %v760 = vpack.c.b16 %v758, %v757
        %763 = vmatprep.subr.bf16.mxu0 0
        %764 = vmatpush1.bf16.msra.mxu0 %v759
        %765 = vmatprep.subr.bf16.mxu0 0
        %766 = vmatpush1.bf16.msra.mxu0 %v760
        %767 = vmatprep.subr.bf16.mxu0 0
        %768 = vmatpush1.bf16.msra.mxu0 0
        %769 = vmatprep.subr.bf16.mxu0 0
        %770 = vmatpush1.bf16.msra.mxu0 0
        %771 = vmatprep.subr.bf16.mxu0 0
        %772 = vmatpush1.bf16.msra.mxu0 0
        %773 = vmatprep.subr.bf16.mxu0 0
        %774 = vmatpush1.bf16.msra.mxu0 0
        %775 = vmatprep.subr.bf16.mxu0 0
        %776 = vmatpush1.bf16.msra.mxu0 0
        %777 = vmatprep.subr.bf16.mxu0 0
        %778 = vmatpush1.bf16.msra.mxu0 0
        %779 = vmatprep.subr.bf16.mxu0 0
        %780 = vmatpush1.bf16.msra.mxu0 0
        %781 = vmatprep.subr.bf16.mxu0 0
        %782 = vmatpush1.bf16.msra.mxu0 0
        %783 = vmatprep.subr.bf16.mxu0 0
        %784 = vmatpush1.bf16.msra.mxu0 0
        %785 = vmatprep.subr.bf16.mxu0 0
        %786 = vmatpush1.bf16.msra.mxu0 0
        %787 = vmatprep.subr.bf16.mxu0 0
        %788 = vmatpush1.bf16.msra.mxu0 0
        %789 = vmatprep.subr.bf16.mxu0 0
        %790 = vmatpush1.bf16.msra.mxu0 0
        %791 = vmatprep.subr.bf16.mxu0 0
        %792 = vmatpush1.bf16.msra.mxu0 0
        %793 = vmatprep.subr.bf16.mxu0 0
        %794 = vmatpush1.bf16.msra.mxu0 0
        %795 = vmatprep.mubr.bf16.mxu0 0
        %796 = vmatmul.mubr.bf16.gmra.mrb[0].mxu0 %v311
        %v797 = vpop.f32.mrb[0].mxu0
        %v798 = vadd.f32 0.0, %v797
        %v799 = vpop.f32.mrb[0].mxu0
        %v800 = vpop.f32.mrb[0].mxu0
        %v801 = vpop.f32.mrb[0].mxu0
        %802 = vdwg.mxu0
        %v807 = vunpack.c.l.b16 %v739
        %v808 = vunpack.c.l.b16 %v740
        %v809 = vunpack.c.l.b16 %v741
        %v810 = vunpack.c.l.b16 %v742
        %v811 = vpack.c.b16 %v808, %v807
        %v812 = vpack.c.b16 %v810, %v809
        %815 = vmatprep.subr.bf16.mxu0 0
        %816 = vmatpush1.bf16.msra.mxu0 %v811
        %817 = vmatprep.subr.bf16.mxu0 0
        %818 = vmatpush1.bf16.msra.mxu0 %v812
        %819 = vmatprep.subr.bf16.mxu0 0
        %820 = vmatpush1.bf16.msra.mxu0 0
        %821 = vmatprep.subr.bf16.mxu0 0
        %822 = vmatpush1.bf16.msra.mxu0 0
        %823 = vmatprep.subr.bf16.mxu0 0
        %824 = vmatpush1.bf16.msra.mxu0 0
        %825 = vmatprep.subr.bf16.mxu0 0
        %826 = vmatpush1.bf16.msra.mxu0 0
        %827 = vmatprep.subr.bf16.mxu0 0
        %828 = vmatpush1.bf16.msra.mxu0 0
        %829 = vmatprep.subr.bf16.mxu0 0
        %830 = vmatpush1.bf16.msra.mxu0 0
        %831 = vmatprep.subr.bf16.mxu0 0
        %832 = vmatpush1.bf16.msra.mxu0 0
        %833 = vmatprep.subr.bf16.mxu0 0
        %834 = vmatpush1.bf16.msra.mxu0 0
        %835 = vmatprep.subr.bf16.mxu0 0
        %836 = vmatpush1.bf16.msra.mxu0 0
        %837 = vmatprep.subr.bf16.mxu0 0
        %838 = vmatpush1.bf16.msra.mxu0 0
        %839 = vmatprep.subr.bf16.mxu0 0
        %840 = vmatpush1.bf16.msra.mxu0 0
        %841 = vmatprep.subr.bf16.mxu0 0
        %842 = vmatpush1.bf16.msra.mxu0 0
        %843 = vmatprep.subr.bf16.mxu0 0
        %844 = vmatpush1.bf16.msra.mxu0 0
        %845 = vmatprep.subr.bf16.mxu0 0
        %846 = vmatpush1.bf16.msra.mxu0 0
        %847 = vmatprep.mubr.bf16.mxu0 0
        %848 = vmatmul.mubr.bf16.gmra.mrb[0].mxu0 %v311
        %v849 = vpop.f32.mrb[0].mxu0
        %v850 = vadd.f32 0.0, %v849
        %v851 = vpop.f32.mrb[0].mxu0
        %v852 = vpop.f32.mrb[0].mxu0
        %v853 = vpop.f32.mrb[0].mxu0
        %854 = vdwg.mxu0
        %v859 = vunpack.c.l.b16 %v743
        %v860 = vunpack.c.l.b16 %v744
        %v861 = vunpack.c.l.b16 %v745
        %v862 = vunpack.c.l.b16 %v746
        %v863 = vpack.c.b16 %v860, %v859
        %v864 = vpack.c.b16 %v862, %v861
        %867 = vmatprep.subr.bf16.mxu0 0
        %868 = vmatpush1.bf16.msra.mxu0 %v863
        %869 = vmatprep.subr.bf16.mxu0 0
        %870 = vmatpush1.bf16.msra.mxu0 %v864
        %871 = vmatprep.subr.bf16.mxu0 0
        %872 = vmatpush1.bf16.msra.mxu0 0
        %873 = vmatprep.subr.bf16.mxu0 0
        %874 = vmatpush1.bf16.msra.mxu0 0
        %875 = vmatprep.subr.bf16.mxu0 0
        %876 = vmatpush1.bf16.msra.mxu0 0
        %877 = vmatprep.subr.bf16.mxu0 0
        %878 = vmatpush1.bf16.msra.mxu0 0
        %879 = vmatprep.subr.bf16.mxu0 0
        %880 = vmatpush1.bf16.msra.mxu0 0
        %881 = vmatprep.subr.bf16.mxu0 0
        %882 = vmatpush1.bf16.msra.mxu0 0
        %883 = vmatprep.subr.bf16.mxu0 0
        %884 = vmatpush1.bf16.msra.mxu0 0
        %885 = vmatprep.subr.bf16.mxu0 0
        %886 = vmatpush1.bf16.msra.mxu0 0
        %887 = vmatprep.subr.bf16.mxu0 0
        %888 = vmatpush1.bf16.msra.mxu0 0
        %889 = vmatprep.subr.bf16.mxu0 0
        %890 = vmatpush1.bf16.msra.mxu0 0
        %891 = vmatprep.subr.bf16.mxu0 0
        %892 = vmatpush1.bf16.msra.mxu0 0
        %893 = vmatprep.subr.bf16.mxu0 0
        %894 = vmatpush1.bf16.msra.mxu0 0
        %895 = vmatprep.subr.bf16.mxu0 0
        %896 = vmatpush1.bf16.msra.mxu0 0
        %897 = vmatprep.subr.bf16.mxu0 0
        %898 = vmatpush1.bf16.msra.mxu0 0
        %899 = vmatprep.mubr.bf16.mxu0 0
        %900 = vmatmul.mubr.bf16.gmra.mrb[0].mxu0 %v311
        %v901 = vpop.f32.mrb[0].mxu0
        %v902 = vadd.f32 0.0, %v901
        %v903 = vpop.f32.mrb[0].mxu0
        %v904 = vpop.f32.mrb[0].mxu0
        %v905 = vpop.f32.mrb[0].mxu0
        %906 = vdwg.mxu0
        %v911 = vunpack.c.l.b16 %v747
        %v912 = vunpack.c.l.b16 %v748
        %v913 = vunpack.c.l.b16 %v749
        %v914 = vunpack.c.l.b16 %v750
        %v915 = vpack.c.b16 %v912, %v911
        %v916 = vpack.c.b16 %v914, %v913
        %919 = vmatprep.subr.bf16.mxu0 0
        %920 = vmatpush1.bf16.msra.mxu0 %v915
        %921 = vmatprep.subr.bf16.mxu0 0
        %922 = vmatpush1.bf16.msra.mxu0 %v916
        %923 = vmatprep.subr.bf16.mxu0 0
        %924 = vmatpush1.bf16.msra.mxu0 0
        %925 = vmatprep.subr.bf16.mxu0 0
        %926 = vmatpush1.bf16.msra.mxu0 0
        %927 = vmatprep.subr.bf16.mxu0 0
        %928 = vmatpush1.bf16.msra.mxu0 0
        %929 = vmatprep.subr.bf16.mxu0 0
        %930 = vmatpush1.bf16.msra.mxu0 0
        %931 = vmatprep.subr.bf16.mxu0 0
        %932 = vmatpush1.bf16.msra.mxu0 0
        %933 = vmatprep.subr.bf16.mxu0 0
        %934 = vmatpush1.bf16.msra.mxu0 0
        %935 = vmatprep.subr.bf16.mxu0 0
        %936 = vmatpush1.bf16.msra.mxu0 0
        %937 = vmatprep.subr.bf16.mxu0 0
        %938 = vmatpush1.bf16.msra.mxu0 0
        %939 = vmatprep.subr.bf16.mxu0 0
        %940 = vmatpush1.bf16.msra.mxu0 0
        %941 = vmatprep.subr.bf16.mxu0 0
        %942 = vmatpush1.bf16.msra.mxu0 0
        %943 = vmatprep.subr.bf16.mxu0 0
        %944 = vmatpush1.bf16.msra.mxu0 0
        %945 = vmatprep.subr.bf16.mxu0 0
        %946 = vmatpush1.bf16.msra.mxu0 0
        %947 = vmatprep.subr.bf16.mxu0 0
        %948 = vmatpush1.bf16.msra.mxu0 0
        %949 = vmatprep.subr.bf16.mxu0 0
        %950 = vmatpush1.bf16.msra.mxu0 0
        %951 = vmatprep.mubr.bf16.mxu0 0
        %952 = vmatmul.mubr.bf16.gmra.mrb[0].mxu0 %v311
        %v953 = vpop.f32.mrb[0].mxu0
        %v954 = vadd.f32 0.0, %v953
        %v955 = vpop.f32.mrb[0].mxu0
        %v956 = vpop.f32.mrb[0].mxu0
        %v957 = vpop.f32.mrb[0].mxu0
        %958 = vdwg.mxu0
        %v959 = vpack.c.bf16 %v348, %v348
        %v960 = vpack.c.bf16 %v400, %v400
        %v961 = vpack.c.bf16 %v452, %v452
        %v962 = vpack.c.bf16 %v504, %v504
        %v963 = vpack.c.bf16 %v573, %v573
        %v964 = vpack.c.bf16 %v625, %v625
        %v965 = vpack.c.bf16 %v677, %v677
        %v966 = vpack.c.bf16 %v729, %v729
        %vm967 = vcmask 64512
        %v969 = vsel %vm967, %v959, 0
        %v972 = vsel %vm967, %v963, 0
        %974 = vmatprep.subr.bf16.mxu0 0
        %975 = vmatpush1.bf16.xpose.msra.mxu0 %v972
        %976 = vmatprep.subr.bf16.mxu0 0
        %977 = vmatpush1.bf16.xpose.msra.mxu0 0
        %978 = vmatprep.subr.bf16.mxu0 0
        %979 = vmatpush1.bf16.xpose.msra.mxu0 0
        %980 = vmatprep.subr.bf16.mxu0 0
        %981 = vmatpush1.bf16.xpose.msra.mxu0 0
        %982 = vmatprep.subr.bf16.mxu0 0
        %983 = vmatpush1.bf16.xpose.msra.mxu0 0
        %984 = vmatprep.subr.bf16.mxu0 0
        %985 = vmatpush1.bf16.xpose.msra.mxu0 0
        %986 = vmatprep.subr.bf16.mxu0 0
        %987 = vmatpush1.bf16.xpose.msra.mxu0 0
        %988 = vmatprep.subr.bf16.mxu0 0
        %989 = vmatpush1.bf16.xpose.msra.mxu0 0
        %990 = vmatprep.subr.bf16.mxu0 0
        %991 = vmatpush1.bf16.xpose.msra.mxu0 0
        %992 = vmatprep.subr.bf16.mxu0 0
        %993 = vmatpush1.bf16.xpose.msra.mxu0 0
        %994 = vmatprep.subr.bf16.mxu0 0
        %995 = vmatpush1.bf16.xpose.msra.mxu0 0
        %996 = vmatprep.subr.bf16.mxu0 0
        %997 = vmatpush1.bf16.xpose.msra.mxu0 0
        %998 = vmatprep.subr.bf16.mxu0 0
        %999 = vmatpush1.bf16.xpose.msra.mxu0 0
        %1000 = vmatprep.subr.bf16.mxu0 0
        %1001 = vmatpush1.bf16.xpose.msra.mxu0 0
        %1002 = vmatprep.subr.bf16.mxu0 0
        %1003 = vmatpush1.bf16.xpose.msra.mxu0 0
        %1004 = vmatprep.subr.bf16.mxu0 0
        %1005 = vmatpush1.bf16.xpose.msra.mxu0 0
        %1006 = vmatprep.mubr.bf16.mxu0 0
        %1007 = vmatmul.mubr.bf16.gmra.mrb[0].mxu0 %v969
        %v1008 = vpop.f32.mrb[0].mxu0
        %v1009 = vadd.f32 0.0, %v1008
        %v1010 = vpop.f32.mrb[0].mxu0
        %v1011 = vpop.f32.mrb[0].mxu0
        %v1012 = vpop.f32.mrb[0].mxu0
        %1013 = vdwg.mxu0
        %v1015 = vsel %vm967, %v960, 0
        %v1018 = vsel %vm967, %v964, 0
        %1020 = vmatprep.subr.bf16.mxu0 0
        %1021 = vmatpush1.bf16.xpose.msra.mxu0 %v1018
        %1022 = vmatprep.subr.bf16.mxu0 0
        %1023 = vmatpush1.bf16.xpose.msra.mxu0 0
        %1024 = vmatprep.subr.bf16.mxu0 0
        %1025 = vmatpush1.bf16.xpose.msra.mxu0 0
        %1026 = vmatprep.subr.bf16.mxu0 0
        %1027 = vmatpush1.bf16.xpose.msra.mxu0 0
        %1028 = vmatprep.subr.bf16.mxu0 0
        %1029 = vmatpush1.bf16.xpose.msra.mxu0 0
        %1030 = vmatprep.subr.bf16.mxu0 0
        %1031 = vmatpush1.bf16.xpose.msra.mxu0 0
        %1032 = vmatprep.subr.bf16.mxu0 0
        %1033 = vmatpush1.bf16.xpose.msra.mxu0 0
        %1034 = vmatprep.subr.bf16.mxu0 0
        %1035 = vmatpush1.bf16.xpose.msra.mxu0 0
        %1036 = vmatprep.subr.bf16.mxu0 0
        %1037 = vmatpush1.bf16.xpose.msra.mxu0 0
        %1038 = vmatprep.subr.bf16.mxu0 0
        %1039 = vmatpush1.bf16.xpose.msra.mxu0 0
        %1040 = vmatprep.subr.bf16.mxu0 0
        %1041 = vmatpush1.bf16.xpose.msra.mxu0 0
        %1042 = vmatprep.subr.bf16.mxu0 0
        %1043 = vmatpush1.bf16.xpose.msra.mxu0 0
        %1044 = vmatprep.subr.bf16.mxu0 0
        %1045 = vmatpush1.bf16.xpose.msra.mxu0 0
        %1046 = vmatprep.subr.bf16.mxu0 0
        %1047 = vmatpush1.bf16.xpose.msra.mxu0 0
        %1048 = vmatprep.subr.bf16.mxu0 0
        %1049 = vmatpush1.bf16.xpose.msra.mxu0 0
        %1050 = vmatprep.subr.bf16.mxu0 0
        %1051 = vmatpush1.bf16.xpose.msra.mxu0 0
        %1052 = vmatprep.mubr.bf16.mxu0 0
        %1053 = vmatmul.mubr.bf16.gmra.mrb[0].mxu0 %v1015
        %v1054 = vpop.f32.mrb[0].mxu0
        %v1055 = vadd.f32 0.0, %v1054
        %v1056 = vpop.f32.mrb[0].mxu0
        %v1057 = vpop.f32.mrb[0].mxu0
        %v1058 = vpop.f32.mrb[0].mxu0
        %1059 = vdwg.mxu0
        %v1061 = vsel %vm967, %v961, 0
        %v1064 = vsel %vm967, %v965, 0
        %1066 = vmatprep.subr.bf16.mxu0 0
        %1067 = vmatpush1.bf16.xpose.msra.mxu0 %v1064
        %1068 = vmatprep.subr.bf16.mxu0 0
        %1069 = vmatpush1.bf16.xpose.msra.mxu0 0
        %1070 = vmatprep.subr.bf16.mxu0 0
        %1071 = vmatpush1.bf16.xpose.msra.mxu0 0
        %1072 = vmatprep.subr.bf16.mxu0 0
        %1073 = vmatpush1.bf16.xpose.msra.mxu0 0
        %1074 = vmatprep.subr.bf16.mxu0 0
        %1075 = vmatpush1.bf16.xpose.msra.mxu0 0
        %1076 = vmatprep.subr.bf16.mxu0 0
        %1077 = vmatpush1.bf16.xpose.msra.mxu0 0
        %1078 = vmatprep.subr.bf16.mxu0 0
        %1079 = vmatpush1.bf16.xpose.msra.mxu0 0
        %1080 = vmatprep.subr.bf16.mxu0 0
        %1081 = vmatpush1.bf16.xpose.msra.mxu0 0
        %1082 = vmatprep.subr.bf16.mxu0 0
        %1083 = vmatpush1.bf16.xpose.msra.mxu0 0
        %1084 = vmatprep.subr.bf16.mxu0 0
        %1085 = vmatpush1.bf16.xpose.msra.mxu0 0
        %1086 = vmatprep.subr.bf16.mxu0 0
        %1087 = vmatpush1.bf16.xpose.msra.mxu0 0
        %1088 = vmatprep.subr.bf16.mxu0 0
        %1089 = vmatpush1.bf16.xpose.msra.mxu0 0
        %1090 = vmatprep.subr.bf16.mxu0 0
        %1091 = vmatpush1.bf16.xpose.msra.mxu0 0
        %1092 = vmatprep.subr.bf16.mxu0 0
        %1093 = vmatpush1.bf16.xpose.msra.mxu0 0
        %1094 = vmatprep.subr.bf16.mxu0 0
        %1095 = vmatpush1.bf16.xpose.msra.mxu0 0
        %1096 = vmatprep.subr.bf16.mxu0 0
        %1097 = vmatpush1.bf16.xpose.msra.mxu0 0
        %1098 = vmatprep.mubr.bf16.mxu0 0
        %1099 = vmatmul.mubr.bf16.gmra.mrb[0].mxu0 %v1061
        %v1100 = vpop.f32.mrb[0].mxu0
        %v1101 = vadd.f32 0.0, %v1100
        %v1102 = vpop.f32.mrb[0].mxu0
        %v1103 = vpop.f32.mrb[0].mxu0
        %v1104 = vpop.f32.mrb[0].mxu0
        %1105 = vdwg.mxu0
        %v1107 = vsel %vm967, %v962, 0
        %v1110 = vsel %vm967, %v966, 0
        %1112 = vmatprep.subr.bf16.mxu0 0
        %1113 = vmatpush1.bf16.xpose.msra.mxu0 %v1110
        %1114 = vmatprep.subr.bf16.mxu0 0
        %1115 = vmatpush1.bf16.xpose.msra.mxu0 0
        %1116 = vmatprep.subr.bf16.mxu0 0
        %1117 = vmatpush1.bf16.xpose.msra.mxu0 0
        %1118 = vmatprep.subr.bf16.mxu0 0
        %1119 = vmatpush1.bf16.xpose.msra.mxu0 0
        %1120 = vmatprep.subr.bf16.mxu0 0
        %1121 = vmatpush1.bf16.xpose.msra.mxu0 0
        %1122 = vmatprep.subr.bf16.mxu0 0
        %1123 = vmatpush1.bf16.xpose.msra.mxu0 0
        %1124 = vmatprep.subr.bf16.mxu0 0
        %1125 = vmatpush1.bf16.xpose.msra.mxu0 0
        %1126 = vmatprep.subr.bf16.mxu0 0
        %1127 = vmatpush1.bf16.xpose.msra.mxu0 0
        %1128 = vmatprep.subr.bf16.mxu0 0
        %1129 = vmatpush1.bf16.xpose.msra.mxu0 0
        %1130 = vmatprep.subr.bf16.mxu0 0
        %1131 = vmatpush1.bf16.xpose.msra.mxu0 0
        %1132 = vmatprep.subr.bf16.mxu0 0
        %1133 = vmatpush1.bf16.xpose.msra.mxu0 0
        %1134 = vmatprep.subr.bf16.mxu0 0
        %1135 = vmatpush1.bf16.xpose.msra.mxu0 0
        %1136 = vmatprep.subr.bf16.mxu0 0
        %1137 = vmatpush1.bf16.xpose.msra.mxu0 0
        %1138 = vmatprep.subr.bf16.mxu0 0
        %1139 = vmatpush1.bf16.xpose.msra.mxu0 0
        %1140 = vmatprep.subr.bf16.mxu0 0
        %1141 = vmatpush1.bf16.xpose.msra.mxu0 0
        %1142 = vmatprep.subr.bf16.mxu0 0
        %1143 = vmatpush1.bf16.xpose.msra.mxu0 0
        %1144 = vmatprep.mubr.bf16.mxu0 0
        %1145 = vmatmul.mubr.bf16.gmra.mrb[0].mxu0 %v1107
        %v1146 = vpop.f32.mrb[0].mxu0
        %v1147 = vadd.f32 0.0, %v1146
        %v1148 = vpop.f32.mrb[0].mxu0
        %v1149 = vpop.f32.mrb[0].mxu0
        %v1150 = vpop.f32.mrb[0].mxu0
        %1151 = vdwg.mxu0
        %v1152 = vlaneseq
        %v1153 = vshrl.u32 %v1152, 7
        %v1154 = vlaneseq
        %v1155 = vand.u32 %v1154, 127
        %vm1156 = vcmp.le.s32.totalorder %v1155, %v1153
        %v1157 = vsel %vm1156, 1, 0
        %vm1158 = vcmp.eq.s32.totalorder %v1157, 1
        %v1159 = vsel %vm1158, %v1009, -inf
        %v1160 = vsel %vm1158, %v1055, -inf
        %v1161 = vsel %vm1158, %v1101, -inf
        %v1162 = vsel %vm1158, %v1147, -inf
        %v1163 = vmul.f32 %v1159, 1.442695
        %v1164 = vpow.pop %v1163
        %v1165 = vmul.f32 %v1160, 1.442695
        %v1166 = vpow.pop %v1165
        %v1167 = vmul.f32 %v1161, 1.442695
        %v1168 = vpow.pop %v1167
        %v1169 = vmul.f32 %v1162, 1.442695
        %v1170 = vpow.pop %v1169
        %v1171 = vsel %vm967, %v1164, 0.0
        %1172 = vadd.xlane.f32.xlu0 %v1171
        %v1173 = vpop.xlane.xlu0 %1172
        %v1174 = vsel %vm967, %v1166, 0.0
        %1175 = vadd.xlane.f32.xlu0 %v1174
        %v1176 = vpop.xlane.xlu0 %1175
        %v1177 = vsel %vm967, %v1168, 0.0
        %1178 = vadd.xlane.f32.xlu0 %v1177
        %v1179 = vpop.xlane.xlu0 %1178
        %v1180 = vsel %vm967, %v1170, 0.0
        %1181 = vadd.xlane.f32.xlu0 %v1180
        %v1182 = vpop.xlane.xlu0 %1181
        %v1183 = vrcp.pop %v1173
        %v1184 = vmul.f32 %v1164, %v1183
        %v1185 = vrcp.pop %v1176
        %v1186 = vmul.f32 %v1166, %v1185
        %v1187 = vrcp.pop %v1179
        %v1188 = vmul.f32 %v1168, %v1187
        %v1189 = vrcp.pop %v1182
        %v1190 = vmul.f32 %v1170, %v1189
        %v1191 = vpack.c.bf16 %v1184, %v1184
        %v1192 = vpack.c.bf16 %v1186, %v1186
        %v1193 = vpack.c.bf16 %v1188, %v1188
        %v1194 = vpack.c.bf16 %v1190, %v1190
        %v1195 = vpack.c.bf16 %v798, %v798
        %v1196 = vpack.c.bf16 %v850, %v850
        %v1197 = vpack.c.bf16 %v902, %v902
        %v1198 = vpack.c.bf16 %v954, %v954
        %v1200 = vsel %vm967, %v1191, 0
        %vm1202 = vcmask 1043456
        %v1204 = vsel %vm1202, %v1195, 0
        %1206 = vmatprep.subr.bf16.mxu0 0
        %1207 = vmatpush1.bf16.msra.mxu0 %v1204
        %1208 = vmatprep.subr.bf16.mxu0 0
        %1209 = vmatpush1.bf16.msra.mxu0 0
        %1210 = vmatprep.subr.bf16.mxu0 0
        %1211 = vmatpush1.bf16.msra.mxu0 0
        %1212 = vmatprep.subr.bf16.mxu0 0
        %1213 = vmatpush1.bf16.msra.mxu0 0
        %1214 = vmatprep.subr.bf16.mxu0 0
        %1215 = vmatpush1.bf16.msra.mxu0 0
        %1216 = vmatprep.subr.bf16.mxu0 0
        %1217 = vmatpush1.bf16.msra.mxu0 0
        %1218 = vmatprep.subr.bf16.mxu0 0
        %1219 = vmatpush1.bf16.msra.mxu0 0
        %1220 = vmatprep.subr.bf16.mxu0 0
        %1221 = vmatpush1.bf16.msra.mxu0 0
        %1222 = vmatprep.subr.bf16.mxu0 0
        %1223 = vmatpush1.bf16.msra.mxu0 0
        %1224 = vmatprep.subr.bf16.mxu0 0
        %1225 = vmatpush1.bf16.msra.mxu0 0
        %1226 = vmatprep.subr.bf16.mxu0 0
        %1227 = vmatpush1.bf16.msra.mxu0 0
        %1228 = vmatprep.subr.bf16.mxu0 0
        %1229 = vmatpush1.bf16.msra.mxu0 0
        %1230 = vmatprep.subr.bf16.mxu0 0
        %1231 = vmatpush1.bf16.msra.mxu0 0
        %1232 = vmatprep.subr.bf16.mxu0 0
        %1233 = vmatpush1.bf16.msra.mxu0 0
        %1234 = vmatprep.subr.bf16.mxu0 0
        %1235 = vmatpush1.bf16.msra.mxu0 0
        %1236 = vmatprep.subr.bf16.mxu0 0
        %1237 = vmatpush1.bf16.msra.mxu0 0
        %1238 = vmatprep.mubr.bf16.mxu0 0
        %1239 = vmatmul.mubr.bf16.gmra.mrb[0].mxu0 %v1200
        %v1240 = vpop.f32.mrb[0].mxu0
        %v1241 = vadd.f32 0.0, %v1240
        %v1242 = vpop.f32.mrb[0].mxu0
        %v1243 = vpop.f32.mrb[0].mxu0
        %v1244 = vpop.f32.mrb[0].mxu0
        %1245 = vdwg.mxu0
        %v1247 = vsel %vm967, %v1192, 0
        %v1250 = vsel %vm1202, %v1196, 0
        %1252 = vmatprep.subr.bf16.mxu0 0
        %1253 = vmatpush1.bf16.msra.mxu0 %v1250
        %1254 = vmatprep.subr.bf16.mxu0 0
        %1255 = vmatpush1.bf16.msra.mxu0 0
        %1256 = vmatprep.subr.bf16.mxu0 0
        %1257 = vmatpush1.bf16.msra.mxu0 0
        %1258 = vmatprep.subr.bf16.mxu0 0
        %1259 = vmatpush1.bf16.msra.mxu0 0
        %1260 = vmatprep.subr.bf16.mxu0 0
        %1261 = vmatpush1.bf16.msra.mxu0 0
        %1262 = vmatprep.subr.bf16.mxu0 0
        %1263 = vmatpush1.bf16.msra.mxu0 0
        %1264 = vmatprep.subr.bf16.mxu0 0
        %1265 = vmatpush1.bf16.msra.mxu0 0
        %1266 = vmatprep.subr.bf16.mxu0 0
        %1267 = vmatpush1.bf16.msra.mxu0 0
        %1268 = vmatprep.subr.bf16.mxu0 0
        %1269 = vmatpush1.bf16.msra.mxu0 0
        %1270 = vmatprep.subr.bf16.mxu0 0
        %1271 = vmatpush1.bf16.msra.mxu0 0
        %1272 = vmatprep.subr.bf16.mxu0 0
        %1273 = vmatpush1.bf16.msra.mxu0 0
        %1274 = vmatprep.subr.bf16.mxu0 0
        %1275 = vmatpush1.bf16.msra.mxu0 0
        %1276 = vmatprep.subr.bf16.mxu0 0
        %1277 = vmatpush1.bf16.msra.mxu0 0
        %1278 = vmatprep.subr.bf16.mxu0 0
        %1279 = vmatpush1.bf16.msra.mxu0 0
        %1280 = vmatprep.subr.bf16.mxu0 0
        %1281 = vmatpush1.bf16.msra.mxu0 0
        %1282 = vmatprep.subr.bf16.mxu0 0
        %1283 = vmatpush1.bf16.msra.mxu0 0
        %1284 = vmatprep.mubr.bf16.mxu0 0
        %1285 = vmatmul.mubr.bf16.gmra.mrb[0].mxu0 %v1247
        %v1286 = vpop.f32.mrb[0].mxu0
        %v1287 = vadd.f32 0.0, %v1286
        %v1288 = vpop.f32.mrb[0].mxu0
        %v1289 = vpop.f32.mrb[0].mxu0
        %v1290 = vpop.f32.mrb[0].mxu0
        %1291 = vdwg.mxu0
        %v1293 = vsel %vm967, %v1193, 0
        %v1296 = vsel %vm1202, %v1197, 0
        %1298 = vmatprep.subr.bf16.mxu0 0
        %1299 = vmatpush1.bf16.msra.mxu0 %v1296
        %1300 = vmatprep.subr.bf16.mxu0 0
        %1301 = vmatpush1.bf16.msra.mxu0 0
        %1302 = vmatprep.subr.bf16.mxu0 0
        %1303 = vmatpush1.bf16.msra.mxu0 0
        %1304 = vmatprep.subr.bf16.mxu0 0
        %1305 = vmatpush1.bf16.msra.mxu0 0
        %1306 = vmatprep.subr.bf16.mxu0 0
        %1307 = vmatpush1.bf16.msra.mxu0 0
        %1308 = vmatprep.subr.bf16.mxu0 0
        %1309 = vmatpush1.bf16.msra.mxu0 0
        %1310 = vmatprep.subr.bf16.mxu0 0
        %1311 = vmatpush1.bf16.msra.mxu0 0
        %1312 = vmatprep.subr.bf16.mxu0 0
        %1313 = vmatpush1.bf16.msra.mxu0 0
        %1314 = vmatprep.subr.bf16.mxu0 0
        %1315 = vmatpush1.bf16.msra.mxu0 0
        %1316 = vmatprep.subr.bf16.mxu0 0
        %1317 = vmatpush1.bf16.msra.mxu0 0
        %1318 = vmatprep.subr.bf16.mxu0 0
        %1319 = vmatpush1.bf16.msra.mxu0 0
        %1320 = vmatprep.subr.bf16.mxu0 0
        %1321 = vmatpush1.bf16.msra.mxu0 0
        %1322 = vmatprep.subr.bf16.mxu0 0
        %1323 = vmatpush1.bf16.msra.mxu0 0
        %1324 = vmatprep.subr.bf16.mxu0 0
        %1325 = vmatpush1.bf16.msra.mxu0 0
        %1326 = vmatprep.subr.bf16.mxu0 0
        %1327 = vmatpush1.bf16.msra.mxu0 0
        %1328 = vmatprep.subr.bf16.mxu0 0
        %1329 = vmatpush1.bf16.msra.mxu0 0
        %1330 = vmatprep.mubr.bf16.mxu0 0
        %1331 = vmatmul.mubr.bf16.gmra.mrb[0].mxu0 %v1293
        %v1332 = vpop.f32.mrb[0].mxu0
        %v1333 = vadd.f32 0.0, %v1332
        %v1334 = vpop.f32.mrb[0].mxu0
        %v1335 = vpop.f32.mrb[0].mxu0
        %v1336 = vpop.f32.mrb[0].mxu0
        %1337 = vdwg.mxu0
        %v1339 = vsel %vm967, %v1194, 0
        %v1342 = vsel %vm1202, %v1198, 0
        %1344 = vmatprep.subr.bf16.mxu0 0
        %1345 = vmatpush1.bf16.msra.mxu0 %v1342
        %1346 = vmatprep.subr.bf16.mxu0 0
        %1347 = vmatpush1.bf16.msra.mxu0 0
        %1348 = vmatprep.subr.bf16.mxu0 0
        %1349 = vmatpush1.bf16.msra.mxu0 0
        %1350 = vmatprep.subr.bf16.mxu0 0
        %1351 = vmatpush1.bf16.msra.mxu0 0
        %1352 = vmatprep.subr.bf16.mxu0 0
        %1353 = vmatpush1.bf16.msra.mxu0 0
        %1354 = vmatprep.subr.bf16.mxu0 0
        %1355 = vmatpush1.bf16.msra.mxu0 0
        %1356 = vmatprep.subr.bf16.mxu0 0
        %1357 = vmatpush1.bf16.msra.mxu0 0
        %1358 = vmatprep.subr.bf16.mxu0 0
        %1359 = vmatpush1.bf16.msra.mxu0 0
        %1360 = vmatprep.subr.bf16.mxu0 0
        %1361 = vmatpush1.bf16.msra.mxu0 0
        %1362 = vmatprep.subr.bf16.mxu0 0
        %1363 = vmatpush1.bf16.msra.mxu0 0
        %1364 = vmatprep.subr.bf16.mxu0 0
        %1365 = vmatpush1.bf16.msra.mxu0 0
        %1366 = vmatprep.subr.bf16.mxu0 0
        %1367 = vmatpush1.bf16.msra.mxu0 0
        %1368 = vmatprep.subr.bf16.mxu0 0
        %1369 = vmatpush1.bf16.msra.mxu0 0
        %1370 = vmatprep.subr.bf16.mxu0 0
        %1371 = vmatpush1.bf16.msra.mxu0 0
        %1372 = vmatprep.subr.bf16.mxu0 0
        %1373 = vmatpush1.bf16.msra.mxu0 0
        %1374 = vmatprep.subr.bf16.mxu0 0
        %1375 = vmatpush1.bf16.msra.mxu0 0
        %1376 = vmatprep.mubr.bf16.mxu0 0
        %1377 = vmatmul.mubr.bf16.gmra.mrb[0].mxu0 %v1339
        %v1378 = vpop.f32.mrb[0].mxu0
        %v1379 = vadd.f32 0.0, %v1378
        %v1380 = vpop.f32.mrb[0].mxu0
        %v1381 = vpop.f32.mrb[0].mxu0
        %v1382 = vpop.f32.mrb[0].mxu0
        %1383 = vdwg.mxu0
        %v1384 = vpack.c.bf16 %v1241, %v1241
        %v1385 = vld [vmem:[%s2] sm:$0xf]
        %v1386 = vpack.c.bf16 %v1287, %v1287
        %s1387 = scalar_lea.vmem %s2, 4
        %v1388 = vld [vmem:[%s1387] sm:$0xf]
        %v1390 = vsel %vm967, %v1386, 0
        %v1393 = vsel %vm1202, %v1388, 0
        %1395 = vmatprep.subr.bf16.mxu0 0
        %1396 = vmatpush1.bf16.msra.mxu0 %v1393
        %1397 = vmatprep.subr.bf16.mxu0 0
        %1398 = vmatpush1.bf16.msra.mxu0 0
        %1399 = vmatprep.subr.bf16.mxu0 0
        %1400 = vmatpush1.bf16.msra.mxu0 0
        %1401 = vmatprep.subr.bf16.mxu0 0
        %1402 = vmatpush1.bf16.msra.mxu0 0
        %1403 = vmatprep.subr.bf16.mxu0 0
        %1404 = vmatpush1.bf16.msra.mxu0 0
        %1405 = vmatprep.subr.bf16.mxu0 0
        %1406 = vmatpush1.bf16.msra.mxu0 0
        %1407 = vmatprep.subr.bf16.mxu0 0
        %1408 = vmatpush1.bf16.msra.mxu0 0
        %1409 = vmatprep.subr.bf16.mxu0 0
        %1410 = vmatpush1.bf16.msra.mxu0 0
        %1411 = vmatprep.subr.bf16.mxu0 0
        %1412 = vmatpush1.bf16.msra.mxu0 0
        %1413 = vmatprep.subr.bf16.mxu0 0
        %1414 = vmatpush1.bf16.msra.mxu0 0
        %1415 = vmatprep.subr.bf16.mxu0 0
        %1416 = vmatpush1.bf16.msra.mxu0 0
        %1417 = vmatprep.subr.bf16.mxu0 0
        %1418 = vmatpush1.bf16.msra.mxu0 0
        %1419 = vmatprep.subr.bf16.mxu0 0
        %1420 = vmatpush1.bf16.msra.mxu0 0
        %1421 = vmatprep.subr.bf16.mxu0 0
        %1422 = vmatpush1.bf16.msra.mxu0 0
        %1423 = vmatprep.subr.bf16.mxu0 0
        %1424 = vmatpush1.bf16.msra.mxu0 0
        %1425 = vmatprep.subr.bf16.mxu0 0
        %1426 = vmatpush1.bf16.msra.mxu0 0
        %1427 = vmatprep.mubr.bf16.mxu0 0
        %1428 = vmatmul.mubr.bf16.gmra.mrb[0].mxu0 %v1390
        %v1429 = vpop.f32.mrb[0].mxu0
        %v1430 = vadd.f32 0.0, %v1429
        %v1431 = vpop.f32.mrb[0].mxu0
        %v1432 = vpop.f32.mrb[0].mxu0
        %v1433 = vpop.f32.mrb[0].mxu0
        %1434 = vdwg.mxu0
        %v1436 = vsel %vm967, %v1384, 0
        %v1439 = vsel %vm1202, %v1385, 0
        %1441 = vmatprep.subr.bf16.mxu0 0
        %1442 = vmatpush1.bf16.msra.mxu0 %v1439
        %1443 = vmatprep.subr.bf16.mxu0 0
        %1444 = vmatpush1.bf16.msra.mxu0 0
        %1445 = vmatprep.subr.bf16.mxu0 0
        %1446 = vmatpush1.bf16.msra.mxu0 0
        %1447 = vmatprep.subr.bf16.mxu0 0
        %1448 = vmatpush1.bf16.msra.mxu0 0
        %1449 = vmatprep.subr.bf16.mxu0 0
        %1450 = vmatpush1.bf16.msra.mxu0 0
        %1451 = vmatprep.subr.bf16.mxu0 0
        %1452 = vmatpush1.bf16.msra.mxu0 0
        %1453 = vmatprep.subr.bf16.mxu0 0
        %1454 = vmatpush1.bf16.msra.mxu0 0
        %1455 = vmatprep.subr.bf16.mxu0 0
        %1456 = vmatpush1.bf16.msra.mxu0 0
        %1457 = vmatprep.subr.bf16.mxu0 0
        %1458 = vmatpush1.bf16.msra.mxu0 0
        %1459 = vmatprep.subr.bf16.mxu0 0
        %1460 = vmatpush1.bf16.msra.mxu0 0
        %1461 = vmatprep.subr.bf16.mxu0 0
        %1462 = vmatpush1.bf16.msra.mxu0 0
        %1463 = vmatprep.subr.bf16.mxu0 0
        %1464 = vmatpush1.bf16.msra.mxu0 0
        %1465 = vmatprep.subr.bf16.mxu0 0
        %1466 = vmatpush1.bf16.msra.mxu0 0
        %1467 = vmatprep.subr.bf16.mxu0 0
        %1468 = vmatpush1.bf16.msra.mxu0 0
        %1469 = vmatprep.subr.bf16.mxu0 0
        %1470 = vmatpush1.bf16.msra.mxu0 0
        %1471 = vmatprep.subr.bf16.mxu0 0
        %1472 = vmatpush1.bf16.msra.mxu0 0
        %1473 = vmatprep.mubr.bf16.mxu0 0
        %1474 = vmatmul.mubr.bf16.gmra.mrb[0].mxu0 %v1436
        %v1475 = vpop.f32.mrb[0].mxu0
        %v1476 = vadd.f32 %v1430, %v1475
        %v1477 = vpop.f32.mrb[0].mxu0
        %v1478 = vpop.f32.mrb[0].mxu0
        %v1479 = vpop.f32.mrb[0].mxu0
        %1480 = vdwg.mxu0
        %v1481 = vpack.c.bf16 %v1333, %v1333
        %s1482 = scalar_lea.vmem %s2, 8
        %v1483 = vld [vmem:[%s1482] sm:$0xf]
        %v1485 = vsel %vm967, %v1481, 0
        %v1488 = vsel %vm1202, %v1483, 0
        %1490 = vmatprep.subr.bf16.mxu0 0
        %1491 = vmatpush1.bf16.msra.mxu0 %v1488
        %1492 = vmatprep.subr.bf16.mxu0 0
        %1493 = vmatpush1.bf16.msra.mxu0 0
        %1494 = vmatprep.subr.bf16.mxu0 0
        %1495 = vmatpush1.bf16.msra.mxu0 0
        %1496 = vmatprep.subr.bf16.mxu0 0
        %1497 = vmatpush1.bf16.msra.mxu0 0
        %1498 = vmatprep.subr.bf16.mxu0 0
        %1499 = vmatpush1.bf16.msra.mxu0 0
        %1500 = vmatprep.subr.bf16.mxu0 0
        %1501 = vmatpush1.bf16.msra.mxu0 0
        %1502 = vmatprep.subr.bf16.mxu0 0
        %1503 = vmatpush1.bf16.msra.mxu0 0
        %1504 = vmatprep.subr.bf16.mxu0 0
        %1505 = vmatpush1.bf16.msra.mxu0 0
        %1506 = vmatprep.subr.bf16.mxu0 0
        %1507 = vmatpush1.bf16.msra.mxu0 0
        %1508 = vmatprep.subr.bf16.mxu0 0
        %1509 = vmatpush1.bf16.msra.mxu0 0
        %1510 = vmatprep.subr.bf16.mxu0 0
        %1511 = vmatpush1.bf16.msra.mxu0 0
        %1512 = vmatprep.subr.bf16.mxu0 0
        %1513 = vmatpush1.bf16.msra.mxu0 0
        %1514 = vmatprep.subr.bf16.mxu0 0
        %1515 = vmatpush1.bf16.msra.mxu0 0
        %1516 = vmatprep.subr.bf16.mxu0 0
        %1517 = vmatpush1.bf16.msra.mxu0 0
        %1518 = vmatprep.subr.bf16.mxu0 0
        %1519 = vmatpush1.bf16.msra.mxu0 0
        %1520 = vmatprep.subr.bf16.mxu0 0
        %1521 = vmatpush1.bf16.msra.mxu0 0
        %1522 = vmatprep.mubr.bf16.mxu0 0
        %1523 = vmatmul.mubr.bf16.gmra.mrb[0].mxu0 %v1485
        %v1524 = vpop.f32.mrb[0].mxu0
        %v1525 = vadd.f32 0.0, %v1524
        %v1526 = vpop.f32.mrb[0].mxu0
        %v1527 = vpop.f32.mrb[0].mxu0
        %v1528 = vpop.f32.mrb[0].mxu0
        %1529 = vdwg.mxu0
        %v1530 = vadd.f32 %v1476, %v1525
        %v1531 = vpack.c.bf16 %v1379, %v1379
        %s1532 = scalar_lea.vmem %s2, 12
        %v1533 = vld [vmem:[%s1532] sm:$0xf]
        %v1535 = vsel %vm967, %v1531, 0
        %v1538 = vsel %vm1202, %v1533, 0
        %1540 = vmatprep.subr.bf16.mxu0 0
        %1541 = vmatpush1.bf16.msra.mxu0 %v1538
        %1542 = vmatprep.subr.bf16.mxu0 0
        %1543 = vmatpush1.bf16.msra.mxu0 0
        %1544 = vmatprep.subr.bf16.mxu0 0
        %1545 = vmatpush1.bf16.msra.mxu0 0
        %1546 = vmatprep.subr.bf16.mxu0 0
        %1547 = vmatpush1.bf16.msra.mxu0 0
        %1548 = vmatprep.subr.bf16.mxu0 0
        %1549 = vmatpush1.bf16.msra.mxu0 0
        %1550 = vmatprep.subr.bf16.mxu0 0
        %1551 = vmatpush1.bf16.msra.mxu0 0
        %1552 = vmatprep.subr.bf16.mxu0 0
        %1553 = vmatpush1.bf16.msra.mxu0 0
        %1554 = vmatprep.subr.bf16.mxu0 0
        %1555 = vmatpush1.bf16.msra.mxu0 0
        %1556 = vmatprep.subr.bf16.mxu0 0
        %1557 = vmatpush1.bf16.msra.mxu0 0
        %1558 = vmatprep.subr.bf16.mxu0 0
        %1559 = vmatpush1.bf16.msra.mxu0 0
        %1560 = vmatprep.subr.bf16.mxu0 0
        %1561 = vmatpush1.bf16.msra.mxu0 0
        %1562 = vmatprep.subr.bf16.mxu0 0
        %1563 = vmatpush1.bf16.msra.mxu0 0
        %1564 = vmatprep.subr.bf16.mxu0 0
        %1565 = vmatpush1.bf16.msra.mxu0 0
        %1566 = vmatprep.subr.bf16.mxu0 0
        %1567 = vmatpush1.bf16.msra.mxu0 0
        %1568 = vmatprep.subr.bf16.mxu0 0
        %1569 = vmatpush1.bf16.msra.mxu0 0
        %1570 = vmatprep.subr.bf16.mxu0 0
        %1571 = vmatpush1.bf16.msra.mxu0 0
        %1572 = vmatprep.mubr.bf16.mxu0 0
        %1573 = vmatmul.mubr.bf16.gmra.mrb[0].mxu0 %v1535
        %v1574 = vpop.f32.mrb[0].mxu0
        %v1575 = vadd.f32 0.0, %v1574
        %v1576 = vpop.f32.mrb[0].mxu0
        %v1577 = vpop.f32.mrb[0].mxu0
        %v1578 = vpop.f32.mrb[0].mxu0
        %1579 = vdwg.mxu0
        %v1580 = vadd.f32 %v1530, %v1575
        %v1581 = vlaneseq
        %v1582 = vshrl.u32 %v1581, 7
        %v1583 = vsub.s32 0, %v1582
        %v1584 = vrot.slane %v249, %v1583
        %v1585 = vadd.f32 %v1580, %v1584
        %v1586 = vadd.f32 %v248, %v1585
        %v1587 = vsel %vm256, %v1586, 0.0
        %1588 = vadd.xlane.f32.xlu0 %v1587
        %v1589 = vpop.xlane.xlu0 %1588
        %v1590 = vmul.f32 %v1589, %v260
        %v1591 = vsub.f32 %v1586, %v1590
        %v1592 = vmul.f32 %v1591, %v1591
        %v1593 = vsel %vm256, %v1592, 0.0
        %1594 = vadd.xlane.f32.xlu0 %v1593
        %v1595 = vpop.xlane.xlu0 %1594
        %v1596 = vmul.f32 %v1595, %v260
        %v1597 = vadd.f32 %v1596, 1e-05
        %v1598 = vrsqrt.pop %v1597
        %v1599 = vmul.f32 %v1591, %v1598
        %v1600 = vlaneseq
        %v1601 = vshrl.u32 %v1600, 7
        %v1602 = vsub.s32 0, %v1601
        %v1603 = vrot.slane %v254, %v1602
        %v1604 = vmul.f32 %v1599, %v1603
        %v1605 = vlaneseq
        %v1606 = vshrl.u32 %v1605, 7
        %v1607 = vsub.s32 0, %v1606
        %v1608 = vrot.slane %v255, %v1607
        %v1609 = vadd.f32 %v1604, %v1608
        %v1610 = vpack.c.bf16 %v1609, %v1609
        %v1611 = vld [vmem:[%s3] sm:$0xf]
        %v1612 = vld [vmem:[%s3 + $0x4] sm:$0xf]
        %v1613 = vld [vmem:[%s3 + $0x8] sm:$0xf]
        %v1614 = vld [vmem:[%s3 + $0xc] sm:$0xf]
        %v1615 = vlaneseq
        %v1616 = vshrl.u32 %v1615, 7
        %v1617 = vsub.s32 0, %v1616
        %v1618 = vrot.slane %v250, %v1617
        %v1623 = vunpack.c.l.b16 %v1611
        %v1624 = vunpack.c.l.b16 %v1612
        %v1625 = vunpack.c.l.b16 %v1613
        %v1626 = vunpack.c.l.b16 %v1614
        %v1627 = vpack.c.b16 %v1624, %v1623
        %v1628 = vpack.c.b16 %v1626, %v1625
        %v1632 = vsel %vm256, %v1610, 0
        %1634 = vmatprep.subr.bf16.mxu0 0
        %1635 = vmatpush1.bf16.msra.mxu0 %v1627
        %1636 = vmatprep.subr.bf16.mxu0 0
        %1637 = vmatpush1.bf16.msra.mxu0 %v1628
        %1638 = vmatprep.subr.bf16.mxu0 0
        %1639 = vmatpush1.bf16.msra.mxu0 0
        %1640 = vmatprep.subr.bf16.mxu0 0
        %1641 = vmatpush1.bf16.msra.mxu0 0
        %1642 = vmatprep.subr.bf16.mxu0 0
        %1643 = vmatpush1.bf16.msra.mxu0 0
        %1644 = vmatprep.subr.bf16.mxu0 0
        %1645 = vmatpush1.bf16.msra.mxu0 0
        %1646 = vmatprep.subr.bf16.mxu0 0
        %1647 = vmatpush1.bf16.msra.mxu0 0
        %1648 = vmatprep.subr.bf16.mxu0 0
        %1649 = vmatpush1.bf16.msra.mxu0 0
        %1650 = vmatprep.subr.bf16.mxu0 0
        %1651 = vmatpush1.bf16.msra.mxu0 0
        %1652 = vmatprep.subr.bf16.mxu0 0
        %1653 = vmatpush1.bf16.msra.mxu0 0
        %1654 = vmatprep.subr.bf16.mxu0 0
        %1655 = vmatpush1.bf16.msra.mxu0 0
        %1656 = vmatprep.subr.bf16.mxu0 0
        %1657 = vmatpush1.bf16.msra.mxu0 0
        %1658 = vmatprep.subr.bf16.mxu0 0
        %1659 = vmatpush1.bf16.msra.mxu0 0
        %1660 = vmatprep.subr.bf16.mxu0 0
        %1661 = vmatpush1.bf16.msra.mxu0 0
        %1662 = vmatprep.subr.bf16.mxu0 0
        %1663 = vmatpush1.bf16.msra.mxu0 0
        %1664 = vmatprep.subr.bf16.mxu0 0
        %1665 = vmatpush1.bf16.msra.mxu0 0
        %1666 = vmatprep.mubr.bf16.mxu0 0
        %1667 = vmatmul.mubr.bf16.gmra.mrb[0].mxu0 %v1632
        %v1668 = vpop.f32.mrb[0].mxu0
        %v1669 = vadd.f32 %v1618, %v1668
        %v1670 = vpop.f32.mrb[0].mxu0
        %v1671 = vpop.f32.mrb[0].mxu0
        %v1672 = vpop.f32.mrb[0].mxu0
        %1673 = vdwg.mxu0
        %v1674 = vpack.c.bf16 %v1669, %v1669
        %v1675 = vld [vmem:[%s4] sm:$0xf]
        %v1676 = vld [vmem:[%s4 + $0x4] sm:$0xf]
        %v1677 = vld [vmem:[%s4 + $0x8] sm:$0xf]
        %v1678 = vld [vmem:[%s4 + $0xc] sm:$0xf]
        %v1679 = vld [vmem:[%s4 + $0x10] sm:$0xf]
        %v1680 = vld [vmem:[%s4 + $0x14] sm:$0xf]
        %v1681 = vld [vmem:[%s4 + $0x18] sm:$0xf]
        %v1682 = vld [vmem:[%s4 + $0x1c] sm:$0xf]
        %v1683 = vld [vmem:[%s4 + $0x20] sm:$0xf]
        %v1684 = vld [vmem:[%s4 + $0x24] sm:$0xf]
        %v1685 = vld [vmem:[%s4 + $0x28] sm:$0xf]
        %v1686 = vld [vmem:[%s4 + $0x2c] sm:$0xf]
        %v1687 = vld [vmem:[%s4 + $0x30] sm:$0xf]
        %v1688 = vld [vmem:[%s4 + $0x34] sm:$0xf]
        %v1689 = vld [vmem:[%s4 + $0x38] sm:$0xf]
        %v1690 = vld [vmem:[%s4 + $0x3c] sm:$0xf]
        %v1691 = vlaneseq
        %v1692 = vshrl.u32 %v1691, 7
        %v1693 = vsub.s32 0, %v1692
        %v1694 = vrot.slane %v251, %v1693
        %v1711 = vunpack.c.l.b16 %v1675
        %v1712 = vunpack.c.l.b16 %v1676
        %v1713 = vunpack.c.l.b16 %v1677
        %v1714 = vunpack.c.l.b16 %v1678
        %v1715 = vunpack.c.l.b16 %v1679
        %v1716 = vunpack.c.l.b16 %v1680
        %v1717 = vunpack.c.l.b16 %v1681
        %v1718 = vunpack.c.l.b16 %v1682
        %v1719 = vunpack.c.l.b16 %v1683
        %v1720 = vunpack.c.l.b16 %v1684
        %v1721 = vunpack.c.l.b16 %v1685
        %v1722 = vunpack.c.l.b16 %v1686
        %v1723 = vunpack.c.l.b16 %v1687
        %v1724 = vunpack.c.l.b16 %v1688
        %v1725 = vunpack.c.l.b16 %v1689
        %v1726 = vunpack.c.l.b16 %v1690
        %v1727 = vpack.c.b16 %v1712, %v1711
        %v1728 = vpack.c.b16 %v1714, %v1713
        %v1729 = vpack.c.b16 %v1716, %v1715
        %v1730 = vpack.c.b16 %v1718, %v1717
        %v1731 = vpack.c.b16 %v1720, %v1719
        %v1732 = vpack.c.b16 %v1722, %v1721
        %v1733 = vpack.c.b16 %v1724, %v1723
        %v1734 = vpack.c.b16 %v1726, %v1725
        %1743 = vmatprep.subr.bf16.mxu0 0
        %1744 = vmatpush1.bf16.msra.mxu0 %v1727
        %1745 = vmatprep.subr.bf16.mxu0 0
        %1746 = vmatpush1.bf16.msra.mxu0 %v1728
        %1747 = vmatprep.subr.bf16.mxu0 0
        %1748 = vmatpush1.bf16.msra.mxu0 %v1729
        %1749 = vmatprep.subr.bf16.mxu0 0
        %1750 = vmatpush1.bf16.msra.mxu0 %v1730
        %1751 = vmatprep.subr.bf16.mxu0 0
        %1752 = vmatpush1.bf16.msra.mxu0 %v1731
        %1753 = vmatprep.subr.bf16.mxu0 0
        %1754 = vmatpush1.bf16.msra.mxu0 %v1732
        %1755 = vmatprep.subr.bf16.mxu0 0
        %1756 = vmatpush1.bf16.msra.mxu0 %v1733
        %1757 = vmatprep.subr.bf16.mxu0 0
        %1758 = vmatpush1.bf16.msra.mxu0 %v1734
        %1759 = vmatprep.subr.bf16.mxu0 0
        %1760 = vmatpush1.bf16.msra.mxu0 0
        %1761 = vmatprep.subr.bf16.mxu0 0
        %1762 = vmatpush1.bf16.msra.mxu0 0
        %1763 = vmatprep.subr.bf16.mxu0 0
        %1764 = vmatpush1.bf16.msra.mxu0 0
        %1765 = vmatprep.subr.bf16.mxu0 0
        %1766 = vmatpush1.bf16.msra.mxu0 0
        %1767 = vmatprep.subr.bf16.mxu0 0
        %1768 = vmatpush1.bf16.msra.mxu0 0
        %1769 = vmatprep.subr.bf16.mxu0 0
        %1770 = vmatpush1.bf16.msra.mxu0 0
        %1771 = vmatprep.subr.bf16.mxu0 0
        %1772 = vmatpush1.bf16.msra.mxu0 0
        %1773 = vmatprep.subr.bf16.mxu0 0
        %1774 = vmatpush1.bf16.msra.mxu0 0
        %1775 = vmatprep.mubr.bf16.mxu0 0
        %1776 = vmatmul.mubr.bf16.gmra.mrb[0].mxu0 %v1674
        %v1777 = vpop.f32.mrb[0].mxu0
        %v1778 = vadd.f32 %v1694, %v1777
        %v1779 = vpop.f32.mrb[0].mxu0
        %v1780 = vpop.f32.mrb[0].mxu0
        %v1781 = vpop.f32.mrb[0].mxu0
        %1782 = vdwg.mxu0
        %v1783 = vadd.f32 %v1586, %v1778
        %1784 = vst.msk [vmem:[%s242] sm:$0xff] %vm256, %v1783
        %s1785 = sand.u32 %s159, 1
        %s1786 = scalar_lea.sflag [#allocation3], %s1785
        %s1787 = sand.u32 %s159, 1
        %s1788 = smul.addr %s1787, 8
        %s1789 = scalar_lea.vmem [#allocation2], %s1788
        // Predicated region
        $region45: #{block_forward.1} parent=43 // pred_check
          %p1790 = pneg %p169
        $region46: #{block_forward.1} parent=43 // pred_check_branch
          %1792 = sbr.rel (%p1790) target = $region48
        $region47: #{block_forward.1} parent=43 // pred_region
          %s1794 = ssub.s32 128, 128
          %1795 = vsyncadd %s1786, %s1794
          %s1796 = smul.addr %s20, 128
          %s1797 = scalar_lea.hbm %s6, %s1796
          %s1799 = sshll.u32 %s1789, 4
          %s1800 = int_to_ptr.vmem [resolvable:$true] %s1799
          %1802 = dma.vmem_to_hbm [thread:$0]  %s1800, 128, %s1797, %s1786
        $region48: #{block_forward.1} parent=43 // pred_fallthru
          _
      $region44: #{block_forward.1} parent=5 // pred_fallthru
        _
      %p1803 = scmp.le.s32.totalorder 2, %s15
      // Predicated region
      $region49: #{block_forward.1} parent=5 // pred_check
        %p1804 = pneg %p1803
      $region50: #{block_forward.1} parent=5 // pred_check_branch
        %1806 = sbr.rel (%p1804) target = $region52
      $region51: #{block_forward.1} parent=5 // pred_region
        %s1807 = ssub.s32 %s15, 2
        // Predicated region
        $region53: #{block_forward.1} parent=51 // pred_check
          %p1808 = pneg %p175
        $region54: #{block_forward.1} parent=51 // pred_check_branch
          %1810 = sbr.rel (%p1808) target = $region56
        $region55: #{block_forward.1} parent=51 // pred_region
          %s1811 = sand.u32 %s160, 1
          %s1812 = scalar_lea.sflag [#allocation3], %s1811
          %s1813 = sand.u32 %s160, 1
          %s1814 = smul.addr %s1813, 8
          %s1815 = scalar_lea.vmem [#allocation2], %s1814
          %1816 = dma.done %s1812, 128
        $region56: #{block_forward.1} parent=51 // pred_fallthru
          _
      $region52: #{block_forward.1} parent=5 // pred_fallthru
        _
    $region6: #{block_forward.1} parent=1 // loop_footer
      %s19 = sadd.s32 1, %s15
    $region7: #{block_forward.1} parent=1 // loop_footer_branch
      %14 = sbr.rel target = $region3
    $region8: #{block_forward.1} parent=1 // loop_exit
      _
    %1817 = vsyncpa [#allocation3], 1
    %s1818 = scalar_lea.sflag [#allocation3], 1
    %1819 = vsyncpa %s1818, 1

</llo_original>
